<compile_context>
chip_gen: v7x
topology: tpu7x:2x2x1
jax: 0.10.0
libtpu: 0.0.40
codegen_flags: <defaults>
</compile_context>

<pallas_src>
import functools

import jax
import jax.numpy as jnp
from jax import lax
from jax.experimental import pallas as pl
from jax.experimental.pallas import tpu as pltpu


# --------------------------------------------------------------------------- #
# Weight construction (PyTorch align_corners=False semantics)
# --------------------------------------------------------------------------- #
def _interp_matrix(out_size: int, in_size: int) -> jnp.ndarray:
    """1-D bilinear interpolation matrix (out_size, in_size), align_corners=False."""
    scale = in_size / out_size
    dst = jnp.arange(out_size, dtype=jnp.float32)
    src = (dst + 0.5) * scale - 0.5
    src = jnp.clip(src, 0.0, float(in_size - 1))
    lo = jnp.floor(src).astype(jnp.int32)
    hi = jnp.minimum(lo + 1, in_size - 1)
    w_hi = src - lo.astype(jnp.float32)
    w_lo = 1.0 - w_hi
    cols = jnp.arange(in_size, dtype=jnp.int32)[None, :]
    m = (w_lo[:, None] * (cols == lo[:, None]).astype(jnp.float32)
         + w_hi[:, None] * (cols == hi[:, None]).astype(jnp.float32))
    return m  # rows sum to 1; at clamped edges lo==hi and both weights land on it


# --------------------------------------------------------------------------- #
# Kernel
# --------------------------------------------------------------------------- #
def _interp_kernel(wht_ref, x_ref, wwt_ref, o_ref, *, cols_first: bool,
                   fold_batch: bool):
    # wht_ref : (H_in, H_out)   row-interp weights, transposed   (constant block)
    # x_ref   : (B, H_in, W_in) batch of B (n, c) planes
    # wwt_ref : (W_in, W_out)   col-interp weights, transposed   (constant block)
    # o_ref   : (B, H_out, W_out)
    B, H_in, W_in = x_ref.shape
    H_out = wht_ref.shape[1]
    W_out = wwt_ref.shape[1]

    x = x_ref[...].astype(jnp.float32)      # f32 throughout (matches PyTorch path)
    wht = wht_ref[...]
    wwt = wwt_ref[...]

    if fold_batch:
        # Preferred path: every pass is a single tall, batch-folded MXU matmul;
        # the inter-pass axis swap is a minor-dim (sublane<->lane) transpose on
        # the XLU, so no per-plane matmuls and no materialized Wh broadcast.
        if cols_first:
            t = jnp.dot(x.reshape(B * H_in, W_in), wwt,
                        preferred_element_type=jnp.float32)           # (B*H_in, W_out)
            t = jnp.swapaxes(t.reshape(B, H_in, W_out), 1, 2)         # (B, W_out, H_in)
            out = jnp.dot(t.reshape(B * W_out, H_in), wht,
                          preferred_element_type=jnp.float32)         # (B*W_out, H_out)
            out = jnp.swapaxes(out.reshape(B, W_out, H_out), 1, 2)    # (B, H_out, W_out)
        else:
            xt = jnp.swapaxes(x, 1, 2)                                # (B, W_in, H_in)
            t = jnp.dot(xt.reshape(B * W_in, H_in), wht,
                        preferred_element_type=jnp.float32)           # (B*W_in, H_out)
            t = jnp.swapaxes(t.reshape(B, W_in, H_out), 1, 2)         # (B, H_out, W_in)
            out = jnp.dot(t.reshape(B * H_out, W_in), wwt,
                          preferred_element_type=jnp.float32)         # (B*H_out, W_out)
            out = out.reshape(B, H_out, W_out)
    else:
        # Fallback path (previous formulation): broadcast Wh + batched dot_general.
        wh_b = jnp.broadcast_to(wht.T, (B, H_out, H_in))
        if cols_first:
            t = jnp.dot(x.reshape(B * H_in, W_in), wwt,
                        preferred_element_type=jnp.float32).reshape(B, H_in, W_out)
            out = lax.dot_general(wh_b, t,
                                  dimension_numbers=(((2,), (1,)), ((0,), (0,))),
                                  preferred_element_type=jnp.float32)
        else:
            t = lax.dot_general(wh_b, x,
                                dimension_numbers=(((2,), (1,)), ((0,), (0,))),
                                preferred_element_type=jnp.float32)
            out = jnp.dot(t.reshape(B * H_out, W_in), wwt,
                          preferred_element_type=jnp.float32).reshape(B, H_out, W_out)

    o_ref[...] = out.astype(o_ref.dtype)


# --------------------------------------------------------------------------- #
# Planning helpers
# --------------------------------------------------------------------------- #
def _tpu_hw_params():
    """(physical VMEM bytes, TensorCores per chip) with conservative fallbacks."""
    vmem = 64 * 1024 * 1024  # conservative default = v7x per-core VMEM
    cores = 1
    try:
        info = pltpu.get_tpu_info()
        vmem = int(info.vmem_capacity_bytes)
        cores = int(getattr(info, "num_cores", 0) or getattr(info, "core_count", 0) or 0)
        if cores <= 0:
            # v7x (2 TCs) is the only generation with 64 MiB/TC; v5e/v6e have 128 MiB.
            cores = 2 if vmem <= 80 * 1024 * 1024 else 1
    except Exception:
        pass
    return vmem, cores


def _order_cost(h_in, w_in, h_out, w_out, cols_first):
    """Per-plane cost model: MACs + XLU transpose volume + lane-padding penalty."""
    if cols_first:
        macs = h_in * w_out * (w_in + h_out)
        swap_elems = w_out * (h_in + h_out)
        mid_lane = w_out        # lane width of the inter-pass intermediate
    else:
        macs = h_out * w_in * (h_in + w_out)
        swap_elems = w_in * (h_in + h_out)
        mid_lane = w_in
    lane_pad = (-mid_lane) % 128
    lane_waste = lane_pad / float(mid_lane + lane_pad)
    return macs * (1.0 + 0.25 * lane_waste) + 4.0 * swap_elems


def _choose_plane_batch(nc, h_in, w_in, h_out, w_out, x_bytes, cols_first,
                        budget_bytes, n_cores):
    """Largest plane-batch B that fits the VMEM planning budget (no divisor req)."""
    inter = h_in * w_out if cols_first else h_out * w_in
    fixed = 2 * (h_out * h_in + w_in * w_out) * 4          # double-buffered weights
    per_plane = (2 * h_in * w_in * x_bytes                 # double-buffered input block
                 + 2 * h_out * w_out * x_bytes             # double-buffered output block
                 + 4 * (h_in * w_in                        # f32 upcast of x
                        + 2 * inter                        # intermediate + transposed copy
                        + 2 * h_out * w_out))              # f32 result + transposed copy
    avail = max(budget_bytes - fixed, per_plane)
    b = max(1, int(avail // per_plane))
    if n_cores >= 2 and nc >= 2:
        b = min(b, -(-nc // 2))   # keep grid >= 2 only where 2 TensorCores exist (v7x)
    return max(1, min(b, nc))


# --------------------------------------------------------------------------- #
# Wrapper
# --------------------------------------------------------------------------- #
def interpolate_bilinear(x: jnp.ndarray, size) -> jnp.ndarray:
    """Bilinear resize of an NCHW tensor to `size` (H_out, W_out), align_corners=False."""
    N, C, H_in, W_in = x.shape
    H_out, W_out = size
    NC = N * C

    # Weights stay f32 (PyTorch bilinear is an f32 op); transposed so both passes
    # are right-multiplications (contraction over the lane dim of the data).
    wht = _interp_matrix(H_out, H_in).T    # (H_in, H_out)
    wwt = _interp_matrix(W_out, W_in).T    # (W_in, W_out)

    cols_first = (_order_cost(H_in, W_in, H_out, W_out, True)
                  <= _order_cost(H_in, W_in, H_out, W_out, False))

    vmem_cap, n_cores = _tpu_hw_params()
    vmem_limit = max(32 * 1024 * 1024, int(vmem_cap * 0.8))
    budget = int(vmem_cap * 0.6)

    x_bytes = jnp.dtype(x.dtype).itemsize
    B = _choose_plane_batch(NC, H_in, W_in, H_out, W_out, x_bytes, cols_first,
                            budget, n_cores)
    G = pl.cdiv(NC, B)

    x_flat = x.reshape(NC, H_in, W_in)

    macs_per_plane = (H_in * W_out * (W_in + H_out) if cols_first
                      else H_out * W_in * (H_in + W_out))
    cost = pl.CostEstimate(
        flops=2 * NC * macs_per_plane,
        transcendentals=0,
        bytes_accessed=(NC * H_in * W_in * x_bytes
                        + NC * H_out * W_out * x_bytes
                        + (H_out * H_in + W_in * W_out) * 4),
    )

    def _run(fold_batch):
        kernel = functools.partial(_interp_kernel, cols_first=cols_first,
                                   fold_batch=fold_batch)
        return pl.pallas_call(
            kernel,
            out_shape=jax.ShapeDtypeStruct((NC, H_out, W_out), x.dtype),
            grid_spec=pltpu.PrefetchScalarGridSpec(
                num_scalar_prefetch=0,
                grid=(G,),
                in_specs=[
                    pl.BlockSpec((H_in, H_out), lambda i: (0, 0)),       # Wh^T (const)
                    pl.BlockSpec((B, H_in, W_in), lambda i: (i, 0, 0)),  # plane batch
                    pl.BlockSpec((W_in, W_out), lambda i: (0, 0)),       # Ww^T (const)
                ],
                out_specs=pl.BlockSpec((B, H_out, W_out), lambda i: (i, 0, 0)),
            ),
            compiler_params=pltpu.CompilerParams(
                dimension_semantics=("parallel",),
                vmem_limit_bytes=vmem_limit,
            ),
            cost_estimate=cost,
        )(wht, x_flat, wwt)

    try:
        out_flat = _run(True)          # tall batch-folded matmuls + XLU transposes
    except Exception:
        out_flat = _run(False)         # known-good fallback (broadcast + batched dot)

    return out_flat.reshape(N, C, H_out, W_out)


class Interpolate:
    """JAX/Pallas mirror of the PyTorch Interpolate module (bilinear only)."""

    def __init__(self, size, mode):
        self.size = size
        self.mode = mode
        # TODO(synk): only 'bilinear' (align_corners=False) is implemented; 'nearest'
        # and 'bicubic' would need different weight construction.
        assert mode == "bilinear", "only bilinear mode implemented"

    def __call__(self, x: jnp.ndarray) -> jnp.ndarray:
        return interpolate_bilinear(x, self.size)


if __name__ == "__main__":
    key = jax.random.PRNGKey(0)
    N, C, H, W = 2, 4, 16, 16
    out_size = (32, 32)

    x = jax.random.normal(key, (N, C, H, W), dtype=jnp.float32)

    model = Interpolate(size=out_size, mode="bilinear")
    y = jax.block_until_ready(model(x))

    # Sanity check against a pure-JAX separable reference using the same weights.
    wh = _interp_matrix(out_size[0], H)
    ww = _interp_matrix(out_size[1], W)
    ref = jnp.einsum("oh,nchw,pw->ncop", wh, x, ww)
    assert y.shape == (N, C, out_size[0], out_size[1])
    err = float(jnp.max(jnp.abs(y - ref)))
    assert err < 1e-3, err

    print("KERNEL_OK")
</pallas_src>

<mosaic_0001>
module attributes {stable_mosaic.version = 11 : i64} {
  func.func @_interp_kernel(%arg0: i32, %arg1: memref<16x32xf32, #tpu.memory_space<vmem>>, %arg2: memref<8x16x16xf32, #tpu.memory_space<vmem>>, %arg3: memref<16x32xf32, #tpu.memory_space<vmem>>, %arg4: memref<8x32x32xf32, #tpu.memory_space<vmem>>) attributes {dimension_semantics = [#tpu.dimension_semantics<parallel>], iteration_bounds = array<i64: 1>, scalar_prefetch = 0 : i64, scratch_operands = 0 : i64, tpu.core_type = #tpu.core_type<tc>, window_params = [{pipeline_mode = #tpu.pipeline_mode<synchronous>, transform_indices = @transform_0, window_bounds = array<i64: 16, 32>}, {transform_indices = @transform_1, window_bounds = array<i64: 8, 16, 16>}, {pipeline_mode = #tpu.pipeline_mode<synchronous>, transform_indices = @transform_2, window_bounds = array<i64: 16, 32>}, {transform_indices = @transform_3, window_bounds = array<i64: 8, 32, 32>}]} {
    %c0 = arith.constant 0 : index
    %c0_0 = arith.constant 0 : index
    %c0_1 = arith.constant 0 : index
    %0 = vector.load %arg2[%c0, %c0_0, %c0_1] : memref<8x16x16xf32, #tpu.memory_space<vmem>>, vector<8x16x16xf32>
    %c0_2 = arith.constant 0 : index
    %c0_3 = arith.constant 0 : index
    %1 = vector.load %arg1[%c0_2, %c0_3] : memref<16x32xf32, #tpu.memory_space<vmem>>, vector<16x32xf32>
    %c0_4 = arith.constant 0 : index
    %c0_5 = arith.constant 0 : index
    %2 = vector.load %arg3[%c0_4, %c0_5] : memref<16x32xf32, #tpu.memory_space<vmem>>, vector<16x32xf32>
    %3 = tpu.transpose %0, [0, 2, 1] : vector<8x16x16xf32> -> vector<8x16x16xf32>
    %4 = vector.shape_cast %3 : vector<8x16x16xf32> to vector<128x16xf32>
    %cst = arith.constant dense<0.000000e+00> : vector<128x32xf32>
    %5 = tpu.matmul %4, %1, %cst {dimension_numbers = #tpu.dot_dimension_numbers<[1], [0], [0], [1], [0, 0, 1, 1], [], []>} : vector<128x16xf32>, vector<16x32xf32>, vector<128x32xf32> -> vector<128x32xf32>
    %6 = vector.shape_cast %5 : vector<128x32xf32> to vector<8x16x32xf32>
    %7 = tpu.transpose %6, [0, 2, 1] : vector<8x16x32xf32> -> vector<8x32x16xf32>
    %8 = vector.shape_cast %7 : vector<8x32x16xf32> to vector<256x16xf32>
    %cst_6 = arith.constant dense<0.000000e+00> : vector<256x32xf32>
    %9 = tpu.matmul %8, %2, %cst_6 {dimension_numbers = #tpu.dot_dimension_numbers<[1], [0], [0], [1], [0, 0, 1, 1], [], []>} : vector<256x16xf32>, vector<16x32xf32>, vector<256x32xf32> -> vector<256x32xf32>
    %10 = vector.shape_cast %9 : vector<256x32xf32> to vector<8x32x32xf32>
    %c0_7 = arith.constant 0 : index
    %c0_8 = arith.constant 0 : index
    %c0_9 = arith.constant 0 : index
    %11 = vector.load %arg4[%c0_7, %c0_8, %c0_9] : memref<8x32x32xf32, #tpu.memory_space<vmem>>, vector<8x32x32xf32>
    tpu.vector_store %arg4[%c0_7, %c0_8, %c0_9], %10 {strides = array<i32>} : memref<8x32x32xf32, #tpu.memory_space<vmem>>, vector<8x32x32xf32>,
    return
  }
  func.func @transform_0(%arg0: i32) -> (i32, i32) {
    %c0_i32 = arith.constant 0 : i32
    %c0_i32_0 = arith.constant 0 : i32
    %c0_i32_1 = arith.constant 0 : i32
    return %c0_i32, %c0_i32_0 : i32, i32
  }
  func.func @transform_1(%arg0: i32) -> (i32, i32, i32) {
    %c0_i32 = arith.constant 0 : i32
    %c0_i32_0 = arith.constant 0 : i32
    %c0_i32_1 = arith.constant 0 : i32
    return %arg0, %c0_i32, %c0_i32_0 : i32, i32, i32
  }
  func.func @transform_2(%arg0: i32) -> (i32, i32) {
    %c0_i32 = arith.constant 0 : i32
    %c0_i32_0 = arith.constant 0 : i32
    %c0_i32_1 = arith.constant 0 : i32
    return %c0_i32, %c0_i32_0 : i32, i32
  }
  func.func @transform_3(%arg0: i32) -> (i32, i32, i32) {
    %c0_i32 = arith.constant 0 : i32
    %c0_i32_0 = arith.constant 0 : i32
    %c0_i32_1 = arith.constant 0 : i32
    return %arg0, %c0_i32, %c0_i32_0 : i32, i32, i32
  }
}

module attributes {stable_mosaic.version = 11 : i64} {
  func.func @_interp_kernel(%arg0: i32, %arg1: memref<16x32xf32, #tpu.memory_space<vmem>>, %arg2: memref<8x16x16xf32, #tpu.memory_space<vmem>>, %arg3: memref<16x32xf32, #tpu.memory_space<vmem>>, %arg4: memref<8x32x32xf32, #tpu.memory_space<vmem>>) attributes {dimension_semantics = [#tpu.dimension_semantics<parallel>], iteration_bounds = array<i64: 1>, scalar_prefetch = 0 : i64, scratch_operands = 0 : i64, tpu.core_type = #tpu.core_type<tc>, window_params = [{pipeline_mode = #tpu.pipeline_mode<synchronous>, transform_indices = @transform_0, window_bounds = array<i64: 16, 32>}, {transform_indices = @transform_1, window_bounds = array<i64: 8, 16, 16>}, {pipeline_mode = #tpu.pipeline_mode<synchronous>, transform_indices = @transform_2, window_bounds = array<i64: 16, 32>}, {transform_indices = @transform_3, window_bounds = array<i64: 8, 32, 32>}]} {
    %c0 = arith.constant 0 : index
    %c0_0 = arith.constant 0 : index
    %c0_1 = arith.constant 0 : index
    %0 = vector.load %arg2[%c0, %c0_0, %c0_1] : memref<8x16x16xf32, #tpu.memory_space<vmem>>, vector<8x16x16xf32>
    %c0_2 = arith.constant 0 : index
    %c0_3 = arith.constant 0 : index
    %1 = vector.load %arg1[%c0_2, %c0_3] : memref<16x32xf32, #tpu.memory_space<vmem>>, vector<16x32xf32>
    %c0_4 = arith.constant 0 : index
    %c0_5 = arith.constant 0 : index
    %2 = vector.load %arg3[%c0_4, %c0_5] : memref<16x32xf32, #tpu.memory_space<vmem>>, vector<16x32xf32>
    %3 = tpu.transpose %1, [1, 0] : vector<16x32xf32> -> vector<32x16xf32>
    %4 = vector.shape_cast %3 : vector<32x16xf32> to vector<1x32x16xf32>
    %5 = vector.broadcast %4 : vector<1x32x16xf32> to vector<8x32x16xf32>
    %cst = arith.constant dense<0.000000e+00> : vector<8x32x16xf32>
    %6 = tpu.matmul %5, %0, %cst {dimension_numbers = #tpu.dot_dimension_numbers<[2], [1], [1], [2], [0, 0, 0, 1, 1, 2], [0], [0]>} : vector<8x32x16xf32>, vector<8x16x16xf32>, vector<8x32x16xf32> -> vector<8x32x16xf32>
    %7 = vector.shape_cast %6 : vector<8x32x16xf32> to vector<256x16xf32>
    %cst_6 = arith.constant dense<0.000000e+00> : vector<256x32xf32>
    %8 = tpu.matmul %7, %2, %cst_6 {dimension_numbers = #tpu.dot_dimension_numbers<[1], [0], [0], [1], [0, 0, 1, 1], [], []>} : vector<256x16xf32>, vector<16x32xf32>, vector<256x32xf32> -> vector<256x32xf32>
    %9 = vector.shape_cast %8 : vector<256x32xf32> to vector<8x32x32xf32>
    %c0_7 = arith.constant 0 : index
    %c0_8 = arith.constant 0 : index
    %c0_9 = arith.constant 0 : index
    %10 = vector.load %arg4[%c0_7, %c0_8, %c0_9] : memref<8x32x32xf32, #tpu.memory_space<vmem>>, vector<8x32x32xf32>
    tpu.vector_store %arg4[%c0_7, %c0_8, %c0_9], %9 {strides = array<i32>} : memref<8x32x32xf32, #tpu.memory_space<vmem>>, vector<8x32x32xf32>,
    return
  }
  func.func @transform_0(%arg0: i32) -> (i32, i32) {
    %c0_i32 = arith.constant 0 : i32
    %c0_i32_0 = arith.constant 0 : i32
    %c0_i32_1 = arith.constant 0 : i32
    return %c0_i32, %c0_i32_0 : i32, i32
  }
  func.func @transform_1(%arg0: i32) -> (i32, i32, i32) {
    %c0_i32 = arith.constant 0 : i32
    %c0_i32_0 = arith.constant 0 : i32
    %c0_i32_1 = arith.constant 0 : i32
    return %arg0, %c0_i32, %c0_i32_0 : i32, i32, i32
  }
  func.func @transform_2(%arg0: i32) -> (i32, i32) {
    %c0_i32 = arith.constant 0 : i32
    %c0_i32_0 = arith.constant 0 : i32
    %c0_i32_1 = arith.constant 0 : i32
    return %c0_i32, %c0_i32_0 : i32, i32
  }
  func.func @transform_3(%arg0: i32) -> (i32, i32, i32) {
    %c0_i32 = arith.constant 0 : i32
    %c0_i32_0 = arith.constant 0 : i32
    %c0_i32_1 = arith.constant 0 : i32
    return %arg0, %c0_i32, %c0_i32_0 : i32, i32, i32
  }
}

</mosaic_0001>

<llo_original>
// kernel: tpu_custom_call.1
$region0: #{tpu_custom_call.1}
  #allocation0 [shape = 'u32[]', space=smem, size = 0x4, offset = 0x4, fixed_abs, tag = 'smem constant byte address 0x4 - core index']
  #allocation1 [shape = 'u32[144,128]{1,0:T(1,128)}', space=vmem, size = 0x12000, scoped, tag = 'internal scratch']
  %s0 = inlined_call_operand.hbm [shape: f32[16,32], index: 0, kind: input, shape index: {}]
  %s1 = inlined_call_operand.hbm [shape: f32[8,16,16], index: 1, kind: input, shape index: {}]
  %s2 = inlined_call_operand.hbm [shape: f32[16,32], index: 2, kind: input, shape index: {}]
  %s3 = inlined_call_operand.hbm [shape: f32[8,32,32], index: 3, kind: output, shape index: {}]
  %s4 = sld [smem:[#allocation0]]
  $region34: #{tpu_custom_call.1} parent=0
    _
  %s6 = ssub.s32 1, %s4
  %s7 = scalar_select 0, %s6, %s4
  $region1: #{tpu_custom_call.1} parent=0
    #allocation2 [shape = 'u8[8192]{0}', space=vmem, size = 0x2000, scoped, tag = 'input window, operand 0, single buffered']
    #allocation3 [shape = 's32[1]{0}', space=sflag, size = 0x4, scoped, tag = 'scoped memory for tpu_custom_call.1']
    #allocation4 [shape = 's32[1]{0}', space=sflag, size = 0x4, scoped, tag = 'scoped memory for tpu_custom_call.1']
    #allocation5 [shape = 'u8[65536]{0}', space=vmem, size = 0x10000, scoped, tag = 'input window, operand 1, single buffered']
    #allocation6 [shape = 's32[1]{0}', space=sflag, size = 0x4, scoped, tag = 'scoped memory for tpu_custom_call.1']
    #allocation7 [shape = 'u8[8192]{0}', space=vmem, size = 0x2000, scoped, tag = 'input window, operand 2, single buffered']
    #allocation8 [shape = 'u8[131072]{0}', space=vmem, size = 0x20000, scoped, tag = 'output window, operand 0, single buffered']
    %8 = vsyncpa [#allocation3], 0
    %9 = vsyncpa [#allocation6], 0
    %10 = vsyncpa [#allocation4], 0
    // Predicated region
    $region2: #{tpu_custom_call.1} parent=1 // pred_check
      _
    $region3: #{tpu_custom_call.1} parent=1 // pred_check_branch
      %12 = sbr.rel (0) target = $region5
    $region4: #{tpu_custom_call.1} parent=1 // pred_region
      %s14 = ssub.s32 256, 256
      %15 = vsyncadd [#allocation3], %s14
      %s16 = sshll.u32 [#allocation2], 4
      %s17 = int_to_ptr.vmem [resolvable:$true] %s16
      %22 = dma.hbm_to_vmem [thread:$0]  %s0, 256, %s17, [#allocation3], 128, 128, 8
    $region5: #{tpu_custom_call.1} parent=1 // pred_fallthru
      _
    // Predicated region
    $region6: #{tpu_custom_call.1} parent=1 // pred_check
      _
    $region7: #{tpu_custom_call.1} parent=1 // pred_check_branch
      %24 = sbr.rel (0) target = $region9
    $region8: #{tpu_custom_call.1} parent=1 // pred_region
      %s26 = ssub.s32 2048, 2048
      %27 = vsyncadd [#allocation6], %s26
      %s28 = sshll.u32 [#allocation5], 4
      %s29 = int_to_ptr.vmem [resolvable:$true] %s28
      %34 = dma.hbm_to_vmem [thread:$0]  %s1, 2048, %s29, [#allocation6], 128, 128, 8
    $region9: #{tpu_custom_call.1} parent=1 // pred_fallthru
      _
    // Predicated region
    $region10: #{tpu_custom_call.1} parent=1 // pred_check
      _
    $region11: #{tpu_custom_call.1} parent=1 // pred_check_branch
      %36 = sbr.rel (0) target = $region13
    $region12: #{tpu_custom_call.1} parent=1 // pred_region
      %s38 = ssub.s32 256, 256
      %39 = vsyncadd [#allocation6], %s38
      %s40 = sshll.u32 [#allocation7], 4
      %s41 = int_to_ptr.vmem [resolvable:$true] %s40
      %46 = dma.hbm_to_vmem [thread:$0]  %s2, 256, %s41, [#allocation6], 128, 128, 8
    $region13: #{tpu_custom_call.1} parent=1 // pred_fallthru
      _
    // Predicated region
    $region14: #{tpu_custom_call.1} parent=1 // pred_check
      _
    $region15: #{tpu_custom_call.1} parent=1 // pred_check_branch
      %48 = sbr.rel (0) target = $region17
    $region16: #{tpu_custom_call.1} parent=1 // pred_region
      %49 = dma.done [#allocation3], 256
    $region17: #{tpu_custom_call.1} parent=1 // pred_fallthru
      _
    // Predicated region
    $region18: #{tpu_custom_call.1} parent=1 // pred_check
      _
    $region19: #{tpu_custom_call.1} parent=1 // pred_check_branch
      %51 = sbr.rel (0) target = $region21
    $region20: #{tpu_custom_call.1} parent=1 // pred_region
      %52 = dma.done [#allocation6], 2048
    $region21: #{tpu_custom_call.1} parent=1 // pred_fallthru
      _
    // Predicated region
    $region22: #{tpu_custom_call.1} parent=1 // pred_check
      _
    $region23: #{tpu_custom_call.1} parent=1 // pred_check_branch
      %54 = sbr.rel (0) target = $region25
    $region24: #{tpu_custom_call.1} parent=1 // pred_region
      %55 = dma.done [#allocation6], 256
    $region25: #{tpu_custom_call.1} parent=1 // pred_fallthru
      _
    %v56 = vld [vmem:[#allocation5] sm:$0xff]
    %v57 = vld [vmem:[#allocation5 + $0x8] sm:$0xff]
    %v58 = vld [vmem:[#allocation5 + $0x10] sm:$0xff]
    %v59 = vld [vmem:[#allocation5 + $0x18] sm:$0xff]
    %v60 = vld [vmem:[#allocation5 + $0x20] sm:$0xff]
    %v61 = vld [vmem:[#allocation5 + $0x28] sm:$0xff]
    %v62 = vld [vmem:[#allocation5 + $0x30] sm:$0xff]
    %v63 = vld [vmem:[#allocation5 + $0x38] sm:$0xff]
    %v64 = vld [vmem:[#allocation5 + $0x40] sm:$0xff]
    %v65 = vld [vmem:[#allocation5 + $0x48] sm:$0xff]
    %v66 = vld [vmem:[#allocation5 + $0x50] sm:$0xff]
    %v67 = vld [vmem:[#allocation5 + $0x58] sm:$0xff]
    %v68 = vld [vmem:[#allocation5 + $0x60] sm:$0xff]
    %v69 = vld [vmem:[#allocation5 + $0x68] sm:$0xff]
    %v70 = vld [vmem:[#allocation5 + $0x70] sm:$0xff]
    %v71 = vld [vmem:[#allocation5 + $0x78] sm:$0xff]
    %v72 = vld [vmem:[#allocation2] sm:$0xff]
    %v73 = vld [vmem:[#allocation2 + $0x8] sm:$0xff]
    %v74 = vld [vmem:[#allocation7] sm:$0xff]
    %v75 = vld [vmem:[#allocation7 + $0x8] sm:$0xff]
    %76 = vxpose.xlu0.b32.start [1/16] %v56, 128
    %77 = vxpose.xlu0.b32.cont [2/16] %v57, 128
    %78 = vxpose.xlu0.b32.cont [3/16] 0.0, 128
    %79 = vxpose.xlu0.b32.cont [4/16] 0.0, 128
    %80 = vxpose.xlu0.b32.cont [5/16] 0.0, 128
    %81 = vxpose.xlu0.b32.cont [6/16] 0.0, 128
    %82 = vxpose.xlu0.b32.cont [7/16] 0.0, 128
    %83 = vxpose.xlu0.b32.cont [8/16] 0.0, 128
    %84 = vxpose.xlu0.b32.cont [9/16] 0.0, 128
    %85 = vxpose.xlu0.b32.cont [10/16] 0.0, 128
    %86 = vxpose.xlu0.b32.cont [11/16] 0.0, 128
    %87 = vxpose.xlu0.b32.cont [12/16] 0.0, 128
    %88 = vxpose.xlu0.b32.cont [13/16] 0.0, 128
    %89 = vxpose.xlu0.b32.cont [14/16] 0.0, 128
    %90 = vxpose.xlu0.b32.cont [15/16] 0.0, 128
    %91 = vxpose.xlu0.b32.end [16/16] 0.0, 128
    %v92 = vpop.trf.xlu0
    %v93 = vpop.trf.xlu0
    %v94 = vpop.trf.xlu0
    %v95 = vpop.trf.xlu0
    %v96 = vpop.trf.xlu0
    %v97 = vpop.trf.xlu0
    %v98 = vpop.trf.xlu0
    %v99 = vpop.trf.xlu0
    %v100 = vpop.trf.xlu0
    %v101 = vpop.trf.xlu0
    %v102 = vpop.trf.xlu0
    %v103 = vpop.trf.xlu0
    %v104 = vpop.trf.xlu0
    %v105 = vpop.trf.xlu0
    %v106 = vpop.trf.xlu0
    %v107 = vpop.trf.xlu0
    %108 = vxpose.xlu0.b32.start [1/16] %v58, 128
    %109 = vxpose.xlu0.b32.cont [2/16] %v59, 128
    %110 = vxpose.xlu0.b32.cont [3/16] 0.0, 128
    %111 = vxpose.xlu0.b32.cont [4/16] 0.0, 128
    %112 = vxpose.xlu0.b32.cont [5/16] 0.0, 128
    %113 = vxpose.xlu0.b32.cont [6/16] 0.0, 128
    %114 = vxpose.xlu0.b32.cont [7/16] 0.0, 128
    %115 = vxpose.xlu0.b32.cont [8/16] 0.0, 128
    %116 = vxpose.xlu0.b32.cont [9/16] 0.0, 128
    %117 = vxpose.xlu0.b32.cont [10/16] 0.0, 128
    %118 = vxpose.xlu0.b32.cont [11/16] 0.0, 128
    %119 = vxpose.xlu0.b32.cont [12/16] 0.0, 128
    %120 = vxpose.xlu0.b32.cont [13/16] 0.0, 128
    %121 = vxpose.xlu0.b32.cont [14/16] 0.0, 128
    %122 = vxpose.xlu0.b32.cont [15/16] 0.0, 128
    %123 = vxpose.xlu0.b32.end [16/16] 0.0, 128
    %v124 = vpop.trf.xlu0
    %v125 = vpop.trf.xlu0
    %v126 = vpop.trf.xlu0
    %v127 = vpop.trf.xlu0
    %v128 = vpop.trf.xlu0
    %v129 = vpop.trf.xlu0
    %v130 = vpop.trf.xlu0
    %v131 = vpop.trf.xlu0
    %v132 = vpop.trf.xlu0
    %v133 = vpop.trf.xlu0
    %v134 = vpop.trf.xlu0
    %v135 = vpop.trf.xlu0
    %v136 = vpop.trf.xlu0
    %v137 = vpop.trf.xlu0
    %v138 = vpop.trf.xlu0
    %v139 = vpop.trf.xlu0
    %140 = vxpose.xlu0.b32.start [1/16] %v60, 128
    %141 = vxpose.xlu0.b32.cont [2/16] %v61, 128
    %142 = vxpose.xlu0.b32.cont [3/16] 0.0, 128
    %143 = vxpose.xlu0.b32.cont [4/16] 0.0, 128
    %144 = vxpose.xlu0.b32.cont [5/16] 0.0, 128
    %145 = vxpose.xlu0.b32.cont [6/16] 0.0, 128
    %146 = vxpose.xlu0.b32.cont [7/16] 0.0, 128
    %147 = vxpose.xlu0.b32.cont [8/16] 0.0, 128
    %148 = vxpose.xlu0.b32.cont [9/16] 0.0, 128
    %149 = vxpose.xlu0.b32.cont [10/16] 0.0, 128
    %150 = vxpose.xlu0.b32.cont [11/16] 0.0, 128
    %151 = vxpose.xlu0.b32.cont [12/16] 0.0, 128
    %152 = vxpose.xlu0.b32.cont [13/16] 0.0, 128
    %153 = vxpose.xlu0.b32.cont [14/16] 0.0, 128
    %154 = vxpose.xlu0.b32.cont [15/16] 0.0, 128
    %155 = vxpose.xlu0.b32.end [16/16] 0.0, 128
    %v156 = vpop.trf.xlu0
    %v157 = vpop.trf.xlu0
    %v158 = vpop.trf.xlu0
    %v159 = vpop.trf.xlu0
    %v160 = vpop.trf.xlu0
    %v161 = vpop.trf.xlu0
    %v162 = vpop.trf.xlu0
    %v163 = vpop.trf.xlu0
    %v164 = vpop.trf.xlu0
    %v165 = vpop.trf.xlu0
    %v166 = vpop.trf.xlu0
    %v167 = vpop.trf.xlu0
    %v168 = vpop.trf.xlu0
    %v169 = vpop.trf.xlu0
    %v170 = vpop.trf.xlu0
    %v171 = vpop.trf.xlu0
    %172 = vxpose.xlu0.b32.start [1/16] %v62, 128
    %173 = vxpose.xlu0.b32.cont [2/16] %v63, 128
    %174 = vxpose.xlu0.b32.cont [3/16] 0.0, 128
    %175 = vxpose.xlu0.b32.cont [4/16] 0.0, 128
    %176 = vxpose.xlu0.b32.cont [5/16] 0.0, 128
    %177 = vxpose.xlu0.b32.cont [6/16] 0.0, 128
    %178 = vxpose.xlu0.b32.cont [7/16] 0.0, 128
    %179 = vxpose.xlu0.b32.cont [8/16] 0.0, 128
    %180 = vxpose.xlu0.b32.cont [9/16] 0.0, 128
    %181 = vxpose.xlu0.b32.cont [10/16] 0.0, 128
    %182 = vxpose.xlu0.b32.cont [11/16] 0.0, 128
    %183 = vxpose.xlu0.b32.cont [12/16] 0.0, 128
    %184 = vxpose.xlu0.b32.cont [13/16] 0.0, 128
    %185 = vxpose.xlu0.b32.cont [14/16] 0.0, 128
    %186 = vxpose.xlu0.b32.cont [15/16] 0.0, 128
    %187 = vxpose.xlu0.b32.end [16/16] 0.0, 128
    %v188 = vpop.trf.xlu0
    %v189 = vpop.trf.xlu0
    %v190 = vpop.trf.xlu0
    %v191 = vpop.trf.xlu0
    %v192 = vpop.trf.xlu0
    %v193 = vpop.trf.xlu0
    %v194 = vpop.trf.xlu0
    %v195 = vpop.trf.xlu0
    %v196 = vpop.trf.xlu0
    %v197 = vpop.trf.xlu0
    %v198 = vpop.trf.xlu0
    %v199 = vpop.trf.xlu0
    %v200 = vpop.trf.xlu0
    %v201 = vpop.trf.xlu0
    %v202 = vpop.trf.xlu0
    %v203 = vpop.trf.xlu0
    %204 = vxpose.xlu0.b32.start [1/16] %v64, 128
    %205 = vxpose.xlu0.b32.cont [2/16] %v65, 128
    %206 = vxpose.xlu0.b32.cont [3/16] 0.0, 128
    %207 = vxpose.xlu0.b32.cont [4/16] 0.0, 128
    %208 = vxpose.xlu0.b32.cont [5/16] 0.0, 128
    %209 = vxpose.xlu0.b32.cont [6/16] 0.0, 128
    %210 = vxpose.xlu0.b32.cont [7/16] 0.0, 128
    %211 = vxpose.xlu0.b32.cont [8/16] 0.0, 128
    %212 = vxpose.xlu0.b32.cont [9/16] 0.0, 128
    %213 = vxpose.xlu0.b32.cont [10/16] 0.0, 128
    %214 = vxpose.xlu0.b32.cont [11/16] 0.0, 128
    %215 = vxpose.xlu0.b32.cont [12/16] 0.0, 128
    %216 = vxpose.xlu0.b32.cont [13/16] 0.0, 128
    %217 = vxpose.xlu0.b32.cont [14/16] 0.0, 128
    %218 = vxpose.xlu0.b32.cont [15/16] 0.0, 128
    %219 = vxpose.xlu0.b32.end [16/16] 0.0, 128
    %v220 = vpop.trf.xlu0
    %v221 = vpop.trf.xlu0
    %v222 = vpop.trf.xlu0
    %v223 = vpop.trf.xlu0
    %v224 = vpop.trf.xlu0
    %v225 = vpop.trf.xlu0
    %v226 = vpop.trf.xlu0
    %v227 = vpop.trf.xlu0
    %v228 = vpop.trf.xlu0
    %v229 = vpop.trf.xlu0
    %v230 = vpop.trf.xlu0
    %v231 = vpop.trf.xlu0
    %v232 = vpop.trf.xlu0
    %v233 = vpop.trf.xlu0
    %v234 = vpop.trf.xlu0
    %v235 = vpop.trf.xlu0
    %236 = vxpose.xlu0.b32.start [1/16] %v66, 128
    %237 = vxpose.xlu0.b32.cont [2/16] %v67, 128
    %238 = vxpose.xlu0.b32.cont [3/16] 0.0, 128
    %239 = vxpose.xlu0.b32.cont [4/16] 0.0, 128
    %240 = vxpose.xlu0.b32.cont [5/16] 0.0, 128
    %241 = vxpose.xlu0.b32.cont [6/16] 0.0, 128
    %242 = vxpose.xlu0.b32.cont [7/16] 0.0, 128
    %243 = vxpose.xlu0.b32.cont [8/16] 0.0, 128
    %244 = vxpose.xlu0.b32.cont [9/16] 0.0, 128
    %245 = vxpose.xlu0.b32.cont [10/16] 0.0, 128
    %246 = vxpose.xlu0.b32.cont [11/16] 0.0, 128
    %247 = vxpose.xlu0.b32.cont [12/16] 0.0, 128
    %248 = vxpose.xlu0.b32.cont [13/16] 0.0, 128
    %249 = vxpose.xlu0.b32.cont [14/16] 0.0, 128
    %250 = vxpose.xlu0.b32.cont [15/16] 0.0, 128
    %251 = vxpose.xlu0.b32.end [16/16] 0.0, 128
    %v252 = vpop.trf.xlu0
    %v253 = vpop.trf.xlu0
    %v254 = vpop.trf.xlu0
    %v255 = vpop.trf.xlu0
    %v256 = vpop.trf.xlu0
    %v257 = vpop.trf.xlu0
    %v258 = vpop.trf.xlu0
    %v259 = vpop.trf.xlu0
    %v260 = vpop.trf.xlu0
    %v261 = vpop.trf.xlu0
    %v262 = vpop.trf.xlu0
    %v263 = vpop.trf.xlu0
    %v264 = vpop.trf.xlu0
    %v265 = vpop.trf.xlu0
    %v266 = vpop.trf.xlu0
    %v267 = vpop.trf.xlu0
    %268 = vxpose.xlu0.b32.start [1/16] %v68, 128
    %269 = vxpose.xlu0.b32.cont [2/16] %v69, 128
    %270 = vxpose.xlu0.b32.cont [3/16] 0.0, 128
    %271 = vxpose.xlu0.b32.cont [4/16] 0.0, 128
    %272 = vxpose.xlu0.b32.cont [5/16] 0.0, 128
    %273 = vxpose.xlu0.b32.cont [6/16] 0.0, 128
    %274 = vxpose.xlu0.b32.cont [7/16] 0.0, 128
    %275 = vxpose.xlu0.b32.cont [8/16] 0.0, 128
    %276 = vxpose.xlu0.b32.cont [9/16] 0.0, 128
    %277 = vxpose.xlu0.b32.cont [10/16] 0.0, 128
    %278 = vxpose.xlu0.b32.cont [11/16] 0.0, 128
    %279 = vxpose.xlu0.b32.cont [12/16] 0.0, 128
    %280 = vxpose.xlu0.b32.cont [13/16] 0.0, 128
    %281 = vxpose.xlu0.b32.cont [14/16] 0.0, 128
    %282 = vxpose.xlu0.b32.cont [15/16] 0.0, 128
    %283 = vxpose.xlu0.b32.end [16/16] 0.0, 128
    %v284 = vpop.trf.xlu0
    %v285 = vpop.trf.xlu0
    %v286 = vpop.trf.xlu0
    %v287 = vpop.trf.xlu0
    %v288 = vpop.trf.xlu0
    %v289 = vpop.trf.xlu0
    %v290 = vpop.trf.xlu0
    %v291 = vpop.trf.xlu0
    %v292 = vpop.trf.xlu0
    %v293 = vpop.trf.xlu0
    %v294 = vpop.trf.xlu0
    %v295 = vpop.trf.xlu0
    %v296 = vpop.trf.xlu0
    %v297 = vpop.trf.xlu0
    %v298 = vpop.trf.xlu0
    %v299 = vpop.trf.xlu0
    %300 = vxpose.xlu0.b32.start [1/16] %v70, 128
    %301 = vxpose.xlu0.b32.cont [2/16] %v71, 128
    %302 = vxpose.xlu0.b32.cont [3/16] 0.0, 128
    %303 = vxpose.xlu0.b32.cont [4/16] 0.0, 128
    %304 = vxpose.xlu0.b32.cont [5/16] 0.0, 128
    %305 = vxpose.xlu0.b32.cont [6/16] 0.0, 128
    %306 = vxpose.xlu0.b32.cont [7/16] 0.0, 128
    %307 = vxpose.xlu0.b32.cont [8/16] 0.0, 128
    %308 = vxpose.xlu0.b32.cont [9/16] 0.0, 128
    %309 = vxpose.xlu0.b32.cont [10/16] 0.0, 128
    %310 = vxpose.xlu0.b32.cont [11/16] 0.0, 128
    %311 = vxpose.xlu0.b32.cont [12/16] 0.0, 128
    %312 = vxpose.xlu0.b32.cont [13/16] 0.0, 128
    %313 = vxpose.xlu0.b32.cont [14/16] 0.0, 128
    %314 = vxpose.xlu0.b32.cont [15/16] 0.0, 128
    %315 = vxpose.xlu0.b32.end [16/16] 0.0, 128
    %v316 = vpop.trf.xlu0
    %v317 = vpop.trf.xlu0
    %v318 = vpop.trf.xlu0
    %v319 = vpop.trf.xlu0
    %v320 = vpop.trf.xlu0
    %v321 = vpop.trf.xlu0
    %v322 = vpop.trf.xlu0
    %v323 = vpop.trf.xlu0
    %v324 = vpop.trf.xlu0
    %v325 = vpop.trf.xlu0
    %v326 = vpop.trf.xlu0
    %v327 = vpop.trf.xlu0
    %v328 = vpop.trf.xlu0
    %v329 = vpop.trf.xlu0
    %v330 = vpop.trf.xlu0
    %v331 = vpop.trf.xlu0
    %vm332 = vcmask 130048
    %v334 = vsel %vm332, %v92, 0
    %v337 = vsel %vm332, %v93, 0
    %v340 = vsel %vm332, %v124, 0
    %v343 = vsel %vm332, %v125, 0
    %v346 = vsel %vm332, %v156, 0
    %v349 = vsel %vm332, %v157, 0
    %v352 = vsel %vm332, %v188, 0
    %v355 = vsel %vm332, %v189, 0
    %v358 = vsel %vm332, %v220, 0
    %v361 = vsel %vm332, %v221, 0
    %v364 = vsel %vm332, %v252, 0
    %v367 = vsel %vm332, %v253, 0
    %v370 = vsel %vm332, %v284, 0
    %v373 = vsel %vm332, %v285, 0
    %v376 = vsel %vm332, %v316, 0
    %v379 = vsel %vm332, %v317, 0
    %381 = vmatprep.subr.mxu0 0.0
    %382 = vmatpush1.msra.mxu0 %v72
    %383 = vmatprep.subr.mxu0 0.0
    %384 = vmatpush1.msra.mxu0 %v73
    %385 = vmatprep.subr.mxu0 0.0
    %386 = vmatpush1.msra.mxu0 0.0
    %387 = vmatprep.subr.mxu0 0.0
    %388 = vmatpush1.msra.mxu0 0.0
    %389 = vmatprep.subr.mxu0 0.0
    %390 = vmatpush1.msra.mxu0 0.0
    %391 = vmatprep.subr.mxu0 0.0
    %392 = vmatpush1.msra.mxu0 0.0
    %393 = vmatprep.subr.mxu0 0.0
    %394 = vmatpush1.msra.mxu0 0.0
    %395 = vmatprep.subr.mxu0 0.0
    %396 = vmatpush1.msra.mxu0 0.0
    %397 = vmatprep.subr.mxu0 0.0
    %398 = vmatpush1.msra.mxu0 0.0
    %399 = vmatprep.subr.mxu0 0.0
    %400 = vmatpush1.msra.mxu0 0.0
    %401 = vmatprep.subr.mxu0 0.0
    %402 = vmatpush1.msra.mxu0 0.0
    %403 = vmatprep.subr.mxu0 0.0
    %404 = vmatpush1.msra.mxu0 0.0
    %405 = vmatprep.subr.mxu0 0.0
    %406 = vmatpush1.msra.mxu0 0.0
    %407 = vmatprep.subr.mxu0 0.0
    %408 = vmatpush1.msra.mxu0 0.0
    %409 = vmatprep.subr.mxu0 0.0
    %410 = vmatpush1.msra.mxu0 0.0
    %411 = vmatprep.subr.mxu0 0.0
    %412 = vmatpush1.msra.mxu0 0.0
    %413 = vmatprep.subr.mxu0 0.0
    %414 = vmatpush1.msra.mxu0 0.0
    %415 = vmatprep.subr.mxu0 0.0
    %416 = vmatpush1.msra.mxu0 0.0
    %417 = vmatprep.subr.mxu0 0.0
    %418 = vmatpush1.msra.mxu0 0.0
    %419 = vmatprep.subr.mxu0 0.0
    %420 = vmatpush1.msra.mxu0 0.0
    %421 = vmatprep.subr.mxu0 0.0
    %422 = vmatpush1.msra.mxu0 0.0
    %423 = vmatprep.subr.mxu0 0.0
    %424 = vmatpush1.msra.mxu0 0.0
    %425 = vmatprep.subr.mxu0 0.0
    %426 = vmatpush1.msra.mxu0 0.0
    %427 = vmatprep.subr.mxu0 0.0
    %428 = vmatpush1.msra.mxu0 0.0
    %429 = vmatprep.subr.mxu0 0.0
    %430 = vmatpush1.msra.mxu0 0.0
    %431 = vmatprep.subr.mxu0 0.0
    %432 = vmatpush1.msra.mxu0 0.0
    %433 = vmatprep.subr.mxu0 0.0
    %434 = vmatpush1.msra.mxu0 0.0
    %435 = vmatprep.subr.mxu0 0.0
    %436 = vmatpush1.msra.mxu0 0.0
    %437 = vmatprep.subr.mxu0 0.0
    %438 = vmatpush1.msra.mxu0 0.0
    %439 = vmatprep.subr.mxu0 0.0
    %440 = vmatpush1.msra.mxu0 0.0
    %441 = vmatprep.subr.mxu0 0.0
    %442 = vmatpush1.msra.mxu0 0.0
    %443 = vmatprep.subr.mxu0 0.0
    %444 = vmatpush1.msra.mxu0 0.0
    %445 = vmatprep.mubr.f32.mxu0 0.0
    %446 = vmatmul.mubr.f32.gmra.mrb[0].mxu0 %v334
    %v447 = vpop.f32.mrb[0].mxu0
    %v448 = vadd.f32 0.0, %v447
    %v449 = vpop.f32.mrb[0].mxu0
    %450 = vmatprep.mubr.f32.mxu0 0.0
    %451 = vmatmul.mubr.f32.gmra.mrb[0].mxu0 %v337
    %v452 = vpop.f32.mrb[0].mxu0
    %v453 = vadd.f32 0.0, %v452
    %v454 = vpop.f32.mrb[0].mxu0
    %455 = vmatprep.mubr.f32.mxu0 0.0
    %456 = vmatmul.mubr.f32.gmra.mrb[0].mxu0 %v340
    %v457 = vpop.f32.mrb[0].mxu0
    %v458 = vadd.f32 0.0, %v457
    %v459 = vpop.f32.mrb[0].mxu0
    %460 = vmatprep.mubr.f32.mxu0 0.0
    %461 = vmatmul.mubr.f32.gmra.mrb[0].mxu0 %v343
    %v462 = vpop.f32.mrb[0].mxu0
    %v463 = vadd.f32 0.0, %v462
    %v464 = vpop.f32.mrb[0].mxu0
    %465 = vmatprep.mubr.f32.mxu0 0.0
    %466 = vmatmul.mubr.f32.gmra.mrb[0].mxu0 %v346
    %v467 = vpop.f32.mrb[0].mxu0
    %v468 = vadd.f32 0.0, %v467
    %v469 = vpop.f32.mrb[0].mxu0
    %470 = vmatprep.mubr.f32.mxu0 0.0
    %471 = vmatmul.mubr.f32.gmra.mrb[0].mxu0 %v349
    %v472 = vpop.f32.mrb[0].mxu0
    %v473 = vadd.f32 0.0, %v472
    %v474 = vpop.f32.mrb[0].mxu0
    %475 = vmatprep.mubr.f32.mxu0 0.0
    %476 = vmatmul.mubr.f32.gmra.mrb[0].mxu0 %v352
    %v477 = vpop.f32.mrb[0].mxu0
    %v478 = vadd.f32 0.0, %v477
    %v479 = vpop.f32.mrb[0].mxu0
    %480 = vmatprep.mubr.f32.mxu0 0.0
    %481 = vmatmul.mubr.f32.gmra.mrb[0].mxu0 %v355
    %v482 = vpop.f32.mrb[0].mxu0
    %v483 = vadd.f32 0.0, %v482
    %v484 = vpop.f32.mrb[0].mxu0
    %485 = vmatprep.mubr.f32.mxu0 0.0
    %486 = vmatmul.mubr.f32.gmra.mrb[0].mxu0 %v358
    %v487 = vpop.f32.mrb[0].mxu0
    %v488 = vadd.f32 0.0, %v487
    %v489 = vpop.f32.mrb[0].mxu0
    %490 = vmatprep.mubr.f32.mxu0 0.0
    %491 = vmatmul.mubr.f32.gmra.mrb[0].mxu0 %v361
    %v492 = vpop.f32.mrb[0].mxu0
    %v493 = vadd.f32 0.0, %v492
    %v494 = vpop.f32.mrb[0].mxu0
    %495 = vmatprep.mubr.f32.mxu0 0.0
    %496 = vmatmul.mubr.f32.gmra.mrb[0].mxu0 %v364
    %v497 = vpop.f32.mrb[0].mxu0
    %v498 = vadd.f32 0.0, %v497
    %v499 = vpop.f32.mrb[0].mxu0
    %500 = vmatprep.mubr.f32.mxu0 0.0
    %501 = vmatmul.mubr.f32.gmra.mrb[0].mxu0 %v367
    %v502 = vpop.f32.mrb[0].mxu0
    %v503 = vadd.f32 0.0, %v502
    %v504 = vpop.f32.mrb[0].mxu0
    %505 = vmatprep.mubr.f32.mxu0 0.0
    %506 = vmatmul.mubr.f32.gmra.mrb[0].mxu0 %v370
    %v507 = vpop.f32.mrb[0].mxu0
    %v508 = vadd.f32 0.0, %v507
    %v509 = vpop.f32.mrb[0].mxu0
    %510 = vmatprep.mubr.f32.mxu0 0.0
    %511 = vmatmul.mubr.f32.gmra.mrb[0].mxu0 %v373
    %v512 = vpop.f32.mrb[0].mxu0
    %v513 = vadd.f32 0.0, %v512
    %v514 = vpop.f32.mrb[0].mxu0
    %515 = vmatprep.mubr.f32.mxu0 0.0
    %516 = vmatmul.mubr.f32.gmra.mrb[0].mxu0 %v376
    %v517 = vpop.f32.mrb[0].mxu0
    %v518 = vadd.f32 0.0, %v517
    %v519 = vpop.f32.mrb[0].mxu0
    %520 = vmatprep.mubr.f32.mxu0 0.0
    %521 = vmatmul.mubr.f32.gmra.mrb[0].mxu0 %v379
    %v522 = vpop.f32.mrb[0].mxu0
    %v523 = vadd.f32 0.0, %v522
    %v524 = vpop.f32.mrb[0].mxu0
    %525 = vdwg.mxu0
    %526 = vxpose.xlu0.b32.start [1/16] %v448, 128
    %527 = vxpose.xlu0.b32.cont [2/16] %v453, 128
    %528 = vxpose.xlu0.b32.cont [3/16] 0.0, 128
    %529 = vxpose.xlu0.b32.cont [4/16] 0.0, 128
    %530 = vxpose.xlu0.b32.cont [5/16] 0.0, 128
    %531 = vxpose.xlu0.b32.cont [6/16] 0.0, 128
    %532 = vxpose.xlu0.b32.cont [7/16] 0.0, 128
    %533 = vxpose.xlu0.b32.cont [8/16] 0.0, 128
    %534 = vxpose.xlu0.b32.cont [9/16] 0.0, 128
    %535 = vxpose.xlu0.b32.cont [10/16] 0.0, 128
    %536 = vxpose.xlu0.b32.cont [11/16] 0.0, 128
    %537 = vxpose.xlu0.b32.cont [12/16] 0.0, 128
    %538 = vxpose.xlu0.b32.cont [13/16] 0.0, 128
    %539 = vxpose.xlu0.b32.cont [14/16] 0.0, 128
    %540 = vxpose.xlu0.b32.cont [15/16] 0.0, 128
    %541 = vxpose.xlu0.b32.end [16/16] 0.0, 128
    %v542 = vpop.trf.xlu0
    %v543 = vpop.trf.xlu0
    %v544 = vpop.trf.xlu0
    %v545 = vpop.trf.xlu0
    %v546 = vpop.trf.xlu0
    %v547 = vpop.trf.xlu0
    %v548 = vpop.trf.xlu0
    %v549 = vpop.trf.xlu0
    %v550 = vpop.trf.xlu0
    %v551 = vpop.trf.xlu0
    %v552 = vpop.trf.xlu0
    %v553 = vpop.trf.xlu0
    %v554 = vpop.trf.xlu0
    %v555 = vpop.trf.xlu0
    %v556 = vpop.trf.xlu0
    %v557 = vpop.trf.xlu0
    %558 = vxpose.xlu0.b32.start [1/16] %v458, 128
    %559 = vxpose.xlu0.b32.cont [2/16] %v463, 128
    %560 = vxpose.xlu0.b32.cont [3/16] 0.0, 128
    %561 = vxpose.xlu0.b32.cont [4/16] 0.0, 128
    %562 = vxpose.xlu0.b32.cont [5/16] 0.0, 128
    %563 = vxpose.xlu0.b32.cont [6/16] 0.0, 128
    %564 = vxpose.xlu0.b32.cont [7/16] 0.0, 128
    %565 = vxpose.xlu0.b32.cont [8/16] 0.0, 128
    %566 = vxpose.xlu0.b32.cont [9/16] 0.0, 128
    %567 = vxpose.xlu0.b32.cont [10/16] 0.0, 128
    %568 = vxpose.xlu0.b32.cont [11/16] 0.0, 128
    %569 = vxpose.xlu0.b32.cont [12/16] 0.0, 128
    %570 = vxpose.xlu0.b32.cont [13/16] 0.0, 128
    %571 = vxpose.xlu0.b32.cont [14/16] 0.0, 128
    %572 = vxpose.xlu0.b32.cont [15/16] 0.0, 128
    %573 = vxpose.xlu0.b32.end [16/16] 0.0, 128
    %v574 = vpop.trf.xlu0
    %v575 = vpop.trf.xlu0
    %v576 = vpop.trf.xlu0
    %v577 = vpop.trf.xlu0
    %v578 = vpop.trf.xlu0
    %v579 = vpop.trf.xlu0
    %v580 = vpop.trf.xlu0
    %v581 = vpop.trf.xlu0
    %v582 = vpop.trf.xlu0
    %v583 = vpop.trf.xlu0
    %v584 = vpop.trf.xlu0
    %v585 = vpop.trf.xlu0
    %v586 = vpop.trf.xlu0
    %v587 = vpop.trf.xlu0
    %v588 = vpop.trf.xlu0
    %v589 = vpop.trf.xlu0
    %590 = vxpose.xlu0.b32.start [1/16] %v468, 128
    %591 = vxpose.xlu0.b32.cont [2/16] %v473, 128
    %592 = vxpose.xlu0.b32.cont [3/16] 0.0, 128
    %593 = vxpose.xlu0.b32.cont [4/16] 0.0, 128
    %594 = vxpose.xlu0.b32.cont [5/16] 0.0, 128
    %595 = vxpose.xlu0.b32.cont [6/16] 0.0, 128
    %596 = vxpose.xlu0.b32.cont [7/16] 0.0, 128
    %597 = vxpose.xlu0.b32.cont [8/16] 0.0, 128
    %598 = vxpose.xlu0.b32.cont [9/16] 0.0, 128
    %599 = vxpose.xlu0.b32.cont [10/16] 0.0, 128
    %600 = vxpose.xlu0.b32.cont [11/16] 0.0, 128
    %601 = vxpose.xlu0.b32.cont [12/16] 0.0, 128
    %602 = vxpose.xlu0.b32.cont [13/16] 0.0, 128
    %603 = vxpose.xlu0.b32.cont [14/16] 0.0, 128
    %604 = vxpose.xlu0.b32.cont [15/16] 0.0, 128
    %605 = vxpose.xlu0.b32.end [16/16] 0.0, 128
    %v606 = vpop.trf.xlu0
    %v607 = vpop.trf.xlu0
    %v608 = vpop.trf.xlu0
    %v609 = vpop.trf.xlu0
    %v610 = vpop.trf.xlu0
    %v611 = vpop.trf.xlu0
    %v612 = vpop.trf.xlu0
    %v613 = vpop.trf.xlu0
    %v614 = vpop.trf.xlu0
    %v615 = vpop.trf.xlu0
    %v616 = vpop.trf.xlu0
    %v617 = vpop.trf.xlu0
    %v618 = vpop.trf.xlu0
    %v619 = vpop.trf.xlu0
    %v620 = vpop.trf.xlu0
    %v621 = vpop.trf.xlu0
    %622 = vxpose.xlu0.b32.start [1/16] %v478, 128
    %623 = vxpose.xlu0.b32.cont [2/16] %v483, 128
    %624 = vxpose.xlu0.b32.cont [3/16] 0.0, 128
    %625 = vxpose.xlu0.b32.cont [4/16] 0.0, 128
    %626 = vxpose.xlu0.b32.cont [5/16] 0.0, 128
    %627 = vxpose.xlu0.b32.cont [6/16] 0.0, 128
    %628 = vxpose.xlu0.b32.cont [7/16] 0.0, 128
    %629 = vxpose.xlu0.b32.cont [8/16] 0.0, 128
    %630 = vxpose.xlu0.b32.cont [9/16] 0.0, 128
    %631 = vxpose.xlu0.b32.cont [10/16] 0.0, 128
    %632 = vxpose.xlu0.b32.cont [11/16] 0.0, 128
    %633 = vxpose.xlu0.b32.cont [12/16] 0.0, 128
    %634 = vxpose.xlu0.b32.cont [13/16] 0.0, 128
    %635 = vxpose.xlu0.b32.cont [14/16] 0.0, 128
    %636 = vxpose.xlu0.b32.cont [15/16] 0.0, 128
    %637 = vxpose.xlu0.b32.end [16/16] 0.0, 128
    %v638 = vpop.trf.xlu0
    %v639 = vpop.trf.xlu0
    %v640 = vpop.trf.xlu0
    %v641 = vpop.trf.xlu0
    %v642 = vpop.trf.xlu0
    %v643 = vpop.trf.xlu0
    %v644 = vpop.trf.xlu0
    %v645 = vpop.trf.xlu0
    %v646 = vpop.trf.xlu0
    %v647 = vpop.trf.xlu0
    %v648 = vpop.trf.xlu0
    %v649 = vpop.trf.xlu0
    %v650 = vpop.trf.xlu0
    %v651 = vpop.trf.xlu0
    %v652 = vpop.trf.xlu0
    %v653 = vpop.trf.xlu0
    %654 = vxpose.xlu0.b32.start [1/16] %v488, 128
    %655 = vxpose.xlu0.b32.cont [2/16] %v493, 128
    %656 = vxpose.xlu0.b32.cont [3/16] 0.0, 128
    %657 = vxpose.xlu0.b32.cont [4/16] 0.0, 128
    %658 = vxpose.xlu0.b32.cont [5/16] 0.0, 128
    %659 = vxpose.xlu0.b32.cont [6/16] 0.0, 128
    %660 = vxpose.xlu0.b32.cont [7/16] 0.0, 128
    %661 = vxpose.xlu0.b32.cont [8/16] 0.0, 128
    %662 = vxpose.xlu0.b32.cont [9/16] 0.0, 128
    %663 = vxpose.xlu0.b32.cont [10/16] 0.0, 128
    %664 = vxpose.xlu0.b32.cont [11/16] 0.0, 128
    %665 = vxpose.xlu0.b32.cont [12/16] 0.0, 128
    %666 = vxpose.xlu0.b32.cont [13/16] 0.0, 128
    %667 = vxpose.xlu0.b32.cont [14/16] 0.0, 128
    %668 = vxpose.xlu0.b32.cont [15/16] 0.0, 128
    %669 = vxpose.xlu0.b32.end [16/16] 0.0, 128
    %v670 = vpop.trf.xlu0
    %v671 = vpop.trf.xlu0
    %v672 = vpop.trf.xlu0
    %v673 = vpop.trf.xlu0
    %v674 = vpop.trf.xlu0
    %v675 = vpop.trf.xlu0
    %v676 = vpop.trf.xlu0
    %v677 = vpop.trf.xlu0
    %v678 = vpop.trf.xlu0
    %v679 = vpop.trf.xlu0
    %v680 = vpop.trf.xlu0
    %v681 = vpop.trf.xlu0
    %v682 = vpop.trf.xlu0
    %v683 = vpop.trf.xlu0
    %v684 = vpop.trf.xlu0
    %v685 = vpop.trf.xlu0
    %686 = vxpose.xlu0.b32.start [1/16] %v498, 128
    %687 = vxpose.xlu0.b32.cont [2/16] %v503, 128
    %688 = vxpose.xlu0.b32.cont [3/16] 0.0, 128
    %689 = vxpose.xlu0.b32.cont [4/16] 0.0, 128
    %690 = vxpose.xlu0.b32.cont [5/16] 0.0, 128
    %691 = vxpose.xlu0.b32.cont [6/16] 0.0, 128
    %692 = vxpose.xlu0.b32.cont [7/16] 0.0, 128
    %693 = vxpose.xlu0.b32.cont [8/16] 0.0, 128
    %694 = vxpose.xlu0.b32.cont [9/16] 0.0, 128
    %695 = vxpose.xlu0.b32.cont [10/16] 0.0, 128
    %696 = vxpose.xlu0.b32.cont [11/16] 0.0, 128
    %697 = vxpose.xlu0.b32.cont [12/16] 0.0, 128
    %698 = vxpose.xlu0.b32.cont [13/16] 0.0, 128
    %699 = vxpose.xlu0.b32.cont [14/16] 0.0, 128
    %700 = vxpose.xlu0.b32.cont [15/16] 0.0, 128
    %701 = vxpose.xlu0.b32.end [16/16] 0.0, 128
    %v702 = vpop.trf.xlu0
    %v703 = vpop.trf.xlu0
    %v704 = vpop.trf.xlu0
    %v705 = vpop.trf.xlu0
    %v706 = vpop.trf.xlu0
    %v707 = vpop.trf.xlu0
    %v708 = vpop.trf.xlu0
    %v709 = vpop.trf.xlu0
    %v710 = vpop.trf.xlu0
    %v711 = vpop.trf.xlu0
    %v712 = vpop.trf.xlu0
    %v713 = vpop.trf.xlu0
    %v714 = vpop.trf.xlu0
    %v715 = vpop.trf.xlu0
    %v716 = vpop.trf.xlu0
    %v717 = vpop.trf.xlu0
    %718 = vxpose.xlu0.b32.start [1/16] %v508, 128
    %719 = vxpose.xlu0.b32.cont [2/16] %v513, 128
    %720 = vxpose.xlu0.b32.cont [3/16] 0.0, 128
    %721 = vxpose.xlu0.b32.cont [4/16] 0.0, 128
    %722 = vxpose.xlu0.b32.cont [5/16] 0.0, 128
    %723 = vxpose.xlu0.b32.cont [6/16] 0.0, 128
    %724 = vxpose.xlu0.b32.cont [7/16] 0.0, 128
    %725 = vxpose.xlu0.b32.cont [8/16] 0.0, 128
    %726 = vxpose.xlu0.b32.cont [9/16] 0.0, 128
    %727 = vxpose.xlu0.b32.cont [10/16] 0.0, 128
    %728 = vxpose.xlu0.b32.cont [11/16] 0.0, 128
    %729 = vxpose.xlu0.b32.cont [12/16] 0.0, 128
    %730 = vxpose.xlu0.b32.cont [13/16] 0.0, 128
    %731 = vxpose.xlu0.b32.cont [14/16] 0.0, 128
    %732 = vxpose.xlu0.b32.cont [15/16] 0.0, 128
    %733 = vxpose.xlu0.b32.end [16/16] 0.0, 128
    %v734 = vpop.trf.xlu0
    %v735 = vpop.trf.xlu0
    %v736 = vpop.trf.xlu0
    %v737 = vpop.trf.xlu0
    %v738 = vpop.trf.xlu0
    %v739 = vpop.trf.xlu0
    %v740 = vpop.trf.xlu0
    %v741 = vpop.trf.xlu0
    %v742 = vpop.trf.xlu0
    %v743 = vpop.trf.xlu0
    %v744 = vpop.trf.xlu0
    %v745 = vpop.trf.xlu0
    %v746 = vpop.trf.xlu0
    %v747 = vpop.trf.xlu0
    %v748 = vpop.trf.xlu0
    %v749 = vpop.trf.xlu0
    %750 = vxpose.xlu0.b32.start [1/16] %v518, 128
    %751 = vxpose.xlu0.b32.cont [2/16] %v523, 128
    %752 = vxpose.xlu0.b32.cont [3/16] 0.0, 128
    %753 = vxpose.xlu0.b32.cont [4/16] 0.0, 128
    %754 = vxpose.xlu0.b32.cont [5/16] 0.0, 128
    %755 = vxpose.xlu0.b32.cont [6/16] 0.0, 128
    %756 = vxpose.xlu0.b32.cont [7/16] 0.0, 128
    %757 = vxpose.xlu0.b32.cont [8/16] 0.0, 128
    %758 = vxpose.xlu0.b32.cont [9/16] 0.0, 128
    %759 = vxpose.xlu0.b32.cont [10/16] 0.0, 128
    %760 = vxpose.xlu0.b32.cont [11/16] 0.0, 128
    %761 = vxpose.xlu0.b32.cont [12/16] 0.0, 128
    %762 = vxpose.xlu0.b32.cont [13/16] 0.0, 128
    %763 = vxpose.xlu0.b32.cont [14/16] 0.0, 128
    %764 = vxpose.xlu0.b32.cont [15/16] 0.0, 128
    %765 = vxpose.xlu0.b32.end [16/16] 0.0, 128
    %v766 = vpop.trf.xlu0
    %v767 = vpop.trf.xlu0
    %v768 = vpop.trf.xlu0
    %v769 = vpop.trf.xlu0
    %v770 = vpop.trf.xlu0
    %v771 = vpop.trf.xlu0
    %v772 = vpop.trf.xlu0
    %v773 = vpop.trf.xlu0
    %v774 = vpop.trf.xlu0
    %v775 = vpop.trf.xlu0
    %v776 = vpop.trf.xlu0
    %v777 = vpop.trf.xlu0
    %v778 = vpop.trf.xlu0
    %v779 = vpop.trf.xlu0
    %v780 = vpop.trf.xlu0
    %v781 = vpop.trf.xlu0
    %v783 = vsel %vm332, %v542, 0
    %v786 = vsel %vm332, %v543, 0
    %v789 = vsel %vm332, %v544, 0
    %v792 = vsel %vm332, %v545, 0
    %v795 = vsel %vm332, %v574, 0
    %v798 = vsel %vm332, %v575, 0
    %v801 = vsel %vm332, %v576, 0
    %v804 = vsel %vm332, %v577, 0
    %v807 = vsel %vm332, %v606, 0
    %v810 = vsel %vm332, %v607, 0
    %v813 = vsel %vm332, %v608, 0
    %v816 = vsel %vm332, %v609, 0
    %v819 = vsel %vm332, %v638, 0
    %v822 = vsel %vm332, %v639, 0
    %v825 = vsel %vm332, %v640, 0
    %v828 = vsel %vm332, %v641, 0
    %v831 = vsel %vm332, %v670, 0
    %v834 = vsel %vm332, %v671, 0
    %v837 = vsel %vm332, %v672, 0
    %v840 = vsel %vm332, %v673, 0
    %v843 = vsel %vm332, %v702, 0
    %v846 = vsel %vm332, %v703, 0
    %v849 = vsel %vm332, %v704, 0
    %v852 = vsel %vm332, %v705, 0
    %v855 = vsel %vm332, %v734, 0
    %v858 = vsel %vm332, %v735, 0
    %v861 = vsel %vm332, %v736, 0
    %v864 = vsel %vm332, %v737, 0
    %v867 = vsel %vm332, %v766, 0
    %v870 = vsel %vm332, %v767, 0
    %v873 = vsel %vm332, %v768, 0
    %v876 = vsel %vm332, %v769, 0
    %878 = vmatprep.subr.mxu0 0.0
    %879 = vmatpush1.msra.mxu0 %v74
    %880 = vmatprep.subr.mxu0 0.0
    %881 = vmatpush1.msra.mxu0 %v75
    %882 = vmatprep.subr.mxu0 0.0
    %883 = vmatpush1.msra.mxu0 0.0
    %884 = vmatprep.subr.mxu0 0.0
    %885 = vmatpush1.msra.mxu0 0.0
    %886 = vmatprep.subr.mxu0 0.0
    %887 = vmatpush1.msra.mxu0 0.0
    %888 = vmatprep.subr.mxu0 0.0
    %889 = vmatpush1.msra.mxu0 0.0
    %890 = vmatprep.subr.mxu0 0.0
    %891 = vmatpush1.msra.mxu0 0.0
    %892 = vmatprep.subr.mxu0 0.0
    %893 = vmatpush1.msra.mxu0 0.0
    %894 = vmatprep.subr.mxu0 0.0
    %895 = vmatpush1.msra.mxu0 0.0
    %896 = vmatprep.subr.mxu0 0.0
    %897 = vmatpush1.msra.mxu0 0.0
    %898 = vmatprep.subr.mxu0 0.0
    %899 = vmatpush1.msra.mxu0 0.0
    %900 = vmatprep.subr.mxu0 0.0
    %901 = vmatpush1.msra.mxu0 0.0
    %902 = vmatprep.subr.mxu0 0.0
    %903 = vmatpush1.msra.mxu0 0.0
    %904 = vmatprep.subr.mxu0 0.0
    %905 = vmatpush1.msra.mxu0 0.0
    %906 = vmatprep.subr.mxu0 0.0
    %907 = vmatpush1.msra.mxu0 0.0
    %908 = vmatprep.subr.mxu0 0.0
    %909 = vmatpush1.msra.mxu0 0.0
    %910 = vmatprep.subr.mxu0 0.0
    %911 = vmatpush1.msra.mxu0 0.0
    %912 = vmatprep.subr.mxu0 0.0
    %913 = vmatpush1.msra.mxu0 0.0
    %914 = vmatprep.subr.mxu0 0.0
    %915 = vmatpush1.msra.mxu0 0.0
    %916 = vmatprep.subr.mxu0 0.0
    %917 = vmatpush1.msra.mxu0 0.0
    %918 = vmatprep.subr.mxu0 0.0
    %919 = vmatpush1.msra.mxu0 0.0
    %920 = vmatprep.subr.mxu0 0.0
    %921 = vmatpush1.msra.mxu0 0.0
    %922 = vmatprep.subr.mxu0 0.0
    %923 = vmatpush1.msra.mxu0 0.0
    %924 = vmatprep.subr.mxu0 0.0
    %925 = vmatpush1.msra.mxu0 0.0
    %926 = vmatprep.subr.mxu0 0.0
    %927 = vmatpush1.msra.mxu0 0.0
    %928 = vmatprep.subr.mxu0 0.0
    %929 = vmatpush1.msra.mxu0 0.0
    %930 = vmatprep.subr.mxu0 0.0
    %931 = vmatpush1.msra.mxu0 0.0
    %932 = vmatprep.subr.mxu0 0.0
    %933 = vmatpush1.msra.mxu0 0.0
    %934 = vmatprep.subr.mxu0 0.0
    %935 = vmatpush1.msra.mxu0 0.0
    %936 = vmatprep.subr.mxu0 0.0
    %937 = vmatpush1.msra.mxu0 0.0
    %938 = vmatprep.subr.mxu0 0.0
    %939 = vmatpush1.msra.mxu0 0.0
    %940 = vmatprep.subr.mxu0 0.0
    %941 = vmatpush1.msra.mxu0 0.0
    %942 = vmatprep.mubr.f32.mxu0 0.0
    %943 = vmatmul.mubr.f32.gmra.mrb[0].mxu0 %v783
    %v944 = vpop.f32.mrb[0].mxu0
    %v945 = vadd.f32 0.0, %v944
    %v946 = vpop.f32.mrb[0].mxu0
    %947 = vmatprep.mubr.f32.mxu0 0.0
    %948 = vmatmul.mubr.f32.gmra.mrb[0].mxu0 %v786
    %v949 = vpop.f32.mrb[0].mxu0
    %v950 = vadd.f32 0.0, %v949
    %v951 = vpop.f32.mrb[0].mxu0
    %952 = vmatprep.mubr.f32.mxu0 0.0
    %953 = vmatmul.mubr.f32.gmra.mrb[0].mxu0 %v789
    %v954 = vpop.f32.mrb[0].mxu0
    %v955 = vadd.f32 0.0, %v954
    %v956 = vpop.f32.mrb[0].mxu0
    %957 = vmatprep.mubr.f32.mxu0 0.0
    %958 = vmatmul.mubr.f32.gmra.mrb[0].mxu0 %v792
    %v959 = vpop.f32.mrb[0].mxu0
    %v960 = vadd.f32 0.0, %v959
    %v961 = vpop.f32.mrb[0].mxu0
    %962 = vmatprep.mubr.f32.mxu0 0.0
    %963 = vmatmul.mubr.f32.gmra.mrb[0].mxu0 %v795
    %v964 = vpop.f32.mrb[0].mxu0
    %v965 = vadd.f32 0.0, %v964
    %v966 = vpop.f32.mrb[0].mxu0
    %967 = vmatprep.mubr.f32.mxu0 0.0
    %968 = vmatmul.mubr.f32.gmra.mrb[0].mxu0 %v798
    %v969 = vpop.f32.mrb[0].mxu0
    %v970 = vadd.f32 0.0, %v969
    %v971 = vpop.f32.mrb[0].mxu0
    %972 = vmatprep.mubr.f32.mxu0 0.0
    %973 = vmatmul.mubr.f32.gmra.mrb[0].mxu0 %v801
    %v974 = vpop.f32.mrb[0].mxu0
    %v975 = vadd.f32 0.0, %v974
    %v976 = vpop.f32.mrb[0].mxu0
    %977 = vmatprep.mubr.f32.mxu0 0.0
    %978 = vmatmul.mubr.f32.gmra.mrb[0].mxu0 %v804
    %v979 = vpop.f32.mrb[0].mxu0
    %v980 = vadd.f32 0.0, %v979
    %v981 = vpop.f32.mrb[0].mxu0
    %982 = vmatprep.mubr.f32.mxu0 0.0
    %983 = vmatmul.mubr.f32.gmra.mrb[0].mxu0 %v807
    %v984 = vpop.f32.mrb[0].mxu0
    %v985 = vadd.f32 0.0, %v984
    %v986 = vpop.f32.mrb[0].mxu0
    %987 = vmatprep.mubr.f32.mxu0 0.0
    %988 = vmatmul.mubr.f32.gmra.mrb[0].mxu0 %v810
    %v989 = vpop.f32.mrb[0].mxu0
    %v990 = vadd.f32 0.0, %v989
    %v991 = vpop.f32.mrb[0].mxu0
    %992 = vmatprep.mubr.f32.mxu0 0.0
    %993 = vmatmul.mubr.f32.gmra.mrb[0].mxu0 %v813
    %v994 = vpop.f32.mrb[0].mxu0
    %v995 = vadd.f32 0.0, %v994
    %v996 = vpop.f32.mrb[0].mxu0
    %997 = vmatprep.mubr.f32.mxu0 0.0
    %998 = vmatmul.mubr.f32.gmra.mrb[0].mxu0 %v816
    %v999 = vpop.f32.mrb[0].mxu0
    %v1000 = vadd.f32 0.0, %v999
    %v1001 = vpop.f32.mrb[0].mxu0
    %1002 = vmatprep.mubr.f32.mxu0 0.0
    %1003 = vmatmul.mubr.f32.gmra.mrb[0].mxu0 %v819
    %v1004 = vpop.f32.mrb[0].mxu0
    %v1005 = vadd.f32 0.0, %v1004
    %v1006 = vpop.f32.mrb[0].mxu0
    %1007 = vmatprep.mubr.f32.mxu0 0.0
    %1008 = vmatmul.mubr.f32.gmra.mrb[0].mxu0 %v822
    %v1009 = vpop.f32.mrb[0].mxu0
    %v1010 = vadd.f32 0.0, %v1009
    %v1011 = vpop.f32.mrb[0].mxu0
    %1012 = vmatprep.mubr.f32.mxu0 0.0
    %1013 = vmatmul.mubr.f32.gmra.mrb[0].mxu0 %v825
    %v1014 = vpop.f32.mrb[0].mxu0
    %v1015 = vadd.f32 0.0, %v1014
    %v1016 = vpop.f32.mrb[0].mxu0
    %1017 = vmatprep.mubr.f32.mxu0 0.0
    %1018 = vmatmul.mubr.f32.gmra.mrb[0].mxu0 %v828
    %v1019 = vpop.f32.mrb[0].mxu0
    %v1020 = vadd.f32 0.0, %v1019
    %v1021 = vpop.f32.mrb[0].mxu0
    %1022 = vmatprep.mubr.f32.mxu0 0.0
    %1023 = vmatmul.mubr.f32.gmra.mrb[0].mxu0 %v831
    %v1024 = vpop.f32.mrb[0].mxu0
    %v1025 = vadd.f32 0.0, %v1024
    %v1026 = vpop.f32.mrb[0].mxu0
    %1027 = vmatprep.mubr.f32.mxu0 0.0
    %1028 = vmatmul.mubr.f32.gmra.mrb[0].mxu0 %v834
    %v1029 = vpop.f32.mrb[0].mxu0
    %v1030 = vadd.f32 0.0, %v1029
    %v1031 = vpop.f32.mrb[0].mxu0
    %1032 = vmatprep.mubr.f32.mxu0 0.0
    %1033 = vmatmul.mubr.f32.gmra.mrb[0].mxu0 %v837
    %v1034 = vpop.f32.mrb[0].mxu0
    %v1035 = vadd.f32 0.0, %v1034
    %v1036 = vpop.f32.mrb[0].mxu0
    %1037 = vmatprep.mubr.f32.mxu0 0.0
    %1038 = vmatmul.mubr.f32.gmra.mrb[0].mxu0 %v840
    %v1039 = vpop.f32.mrb[0].mxu0
    %v1040 = vadd.f32 0.0, %v1039
    %v1041 = vpop.f32.mrb[0].mxu0
    %1042 = vmatprep.mubr.f32.mxu0 0.0
    %1043 = vmatmul.mubr.f32.gmra.mrb[0].mxu0 %v843
    %v1044 = vpop.f32.mrb[0].mxu0
    %v1045 = vadd.f32 0.0, %v1044
    %v1046 = vpop.f32.mrb[0].mxu0
    %1047 = vmatprep.mubr.f32.mxu0 0.0
    %1048 = vmatmul.mubr.f32.gmra.mrb[0].mxu0 %v846
    %v1049 = vpop.f32.mrb[0].mxu0
    %v1050 = vadd.f32 0.0, %v1049
    %v1051 = vpop.f32.mrb[0].mxu0
    %1052 = vmatprep.mubr.f32.mxu0 0.0
    %1053 = vmatmul.mubr.f32.gmra.mrb[0].mxu0 %v849
    %v1054 = vpop.f32.mrb[0].mxu0
    %v1055 = vadd.f32 0.0, %v1054
    %v1056 = vpop.f32.mrb[0].mxu0
    %1057 = vmatprep.mubr.f32.mxu0 0.0
    %1058 = vmatmul.mubr.f32.gmra.mrb[0].mxu0 %v852
    %v1059 = vpop.f32.mrb[0].mxu0
    %v1060 = vadd.f32 0.0, %v1059
    %v1061 = vpop.f32.mrb[0].mxu0
    %1062 = vmatprep.mubr.f32.mxu0 0.0
    %1063 = vmatmul.mubr.f32.gmra.mrb[0].mxu0 %v855
    %v1064 = vpop.f32.mrb[0].mxu0
    %v1065 = vadd.f32 0.0, %v1064
    %v1066 = vpop.f32.mrb[0].mxu0
    %1067 = vmatprep.mubr.f32.mxu0 0.0
    %1068 = vmatmul.mubr.f32.gmra.mrb[0].mxu0 %v858
    %v1069 = vpop.f32.mrb[0].mxu0
    %v1070 = vadd.f32 0.0, %v1069
    %v1071 = vpop.f32.mrb[0].mxu0
    %1072 = vmatprep.mubr.f32.mxu0 0.0
    %1073 = vmatmul.mubr.f32.gmra.mrb[0].mxu0 %v861
    %v1074 = vpop.f32.mrb[0].mxu0
    %v1075 = vadd.f32 0.0, %v1074
    %v1076 = vpop.f32.mrb[0].mxu0
    %1077 = vmatprep.mubr.f32.mxu0 0.0
    %1078 = vmatmul.mubr.f32.gmra.mrb[0].mxu0 %v864
    %v1079 = vpop.f32.mrb[0].mxu0
    %v1080 = vadd.f32 0.0, %v1079
    %v1081 = vpop.f32.mrb[0].mxu0
    %1082 = vmatprep.mubr.f32.mxu0 0.0
    %1083 = vmatmul.mubr.f32.gmra.mrb[0].mxu0 %v867
    %v1084 = vpop.f32.mrb[0].mxu0
    %v1085 = vadd.f32 0.0, %v1084
    %v1086 = vpop.f32.mrb[0].mxu0
    %1087 = vmatprep.mubr.f32.mxu0 0.0
    %1088 = vmatmul.mubr.f32.gmra.mrb[0].mxu0 %v870
    %v1089 = vpop.f32.mrb[0].mxu0
    %v1090 = vadd.f32 0.0, %v1089
    %v1091 = vpop.f32.mrb[0].mxu0
    %1092 = vmatprep.mubr.f32.mxu0 0.0
    %1093 = vmatmul.mubr.f32.gmra.mrb[0].mxu0 %v873
    %v1094 = vpop.f32.mrb[0].mxu0
    %v1095 = vadd.f32 0.0, %v1094
    %v1096 = vpop.f32.mrb[0].mxu0
    %1097 = vmatprep.mubr.f32.mxu0 0.0
    %1098 = vmatmul.mubr.f32.gmra.mrb[0].mxu0 %v876
    %v1099 = vpop.f32.mrb[0].mxu0
    %v1100 = vadd.f32 0.0, %v1099
    %v1101 = vpop.f32.mrb[0].mxu0
    %1102 = vdwg.mxu0
    %vm1103 = vcmask 261120
    %1104 = vst.msk [vmem:[#allocation8] sm:$0xff] %vm1103, %v945
    %1105 = vst.msk [vmem:[#allocation8 + $0x8] sm:$0xff] %vm1103, %v950
    %1106 = vst.msk [vmem:[#allocation8 + $0x10] sm:$0xff] %vm1103, %v955
    %1107 = vst.msk [vmem:[#allocation8 + $0x18] sm:$0xff] %vm1103, %v960
    %1108 = vst.msk [vmem:[#allocation8 + $0x20] sm:$0xff] %vm1103, %v965
    %1109 = vst.msk [vmem:[#allocation8 + $0x28] sm:$0xff] %vm1103, %v970
    %1110 = vst.msk [vmem:[#allocation8 + $0x30] sm:$0xff] %vm1103, %v975
    %1111 = vst.msk [vmem:[#allocation8 + $0x38] sm:$0xff] %vm1103, %v980
    %1112 = vst.msk [vmem:[#allocation8 + $0x40] sm:$0xff] %vm1103, %v985
    %1113 = vst.msk [vmem:[#allocation8 + $0x48] sm:$0xff] %vm1103, %v990
    %1114 = vst.msk [vmem:[#allocation8 + $0x50] sm:$0xff] %vm1103, %v995
    %1115 = vst.msk [vmem:[#allocation8 + $0x58] sm:$0xff] %vm1103, %v1000
    %1116 = vst.msk [vmem:[#allocation8 + $0x60] sm:$0xff] %vm1103, %v1005
    %1117 = vst.msk [vmem:[#allocation8 + $0x68] sm:$0xff] %vm1103, %v1010
    %1118 = vst.msk [vmem:[#allocation8 + $0x70] sm:$0xff] %vm1103, %v1015
    %1119 = vst.msk [vmem:[#allocation8 + $0x78] sm:$0xff] %vm1103, %v1020
    %1120 = vst.msk [vmem:[#allocation8 + $0x80] sm:$0xff] %vm1103, %v1025
    %1121 = vst.msk [vmem:[#allocation8 + $0x88] sm:$0xff] %vm1103, %v1030
    %1122 = vst.msk [vmem:[#allocation8 + $0x90] sm:$0xff] %vm1103, %v1035
    %1123 = vst.msk [vmem:[#allocation8 + $0x98] sm:$0xff] %vm1103, %v1040
    %1124 = vst.msk [vmem:[#allocation8 + $0xa0] sm:$0xff] %vm1103, %v1045
    %1125 = vst.msk [vmem:[#allocation8 + $0xa8] sm:$0xff] %vm1103, %v1050
    %1126 = vst.msk [vmem:[#allocation8 + $0xb0] sm:$0xff] %vm1103, %v1055
    %1127 = vst.msk [vmem:[#allocation8 + $0xb8] sm:$0xff] %vm1103, %v1060
    %1128 = vst.msk [vmem:[#allocation8 + $0xc0] sm:$0xff] %vm1103, %v1065
    %1129 = vst.msk [vmem:[#allocation8 + $0xc8] sm:$0xff] %vm1103, %v1070
    %1130 = vst.msk [vmem:[#allocation8 + $0xd0] sm:$0xff] %vm1103, %v1075
    %1131 = vst.msk [vmem:[#allocation8 + $0xd8] sm:$0xff] %vm1103, %v1080
    %1132 = vst.msk [vmem:[#allocation8 + $0xe0] sm:$0xff] %vm1103, %v1085
    %1133 = vst.msk [vmem:[#allocation8 + $0xe8] sm:$0xff] %vm1103, %v1090
    %1134 = vst.msk [vmem:[#allocation8 + $0xf0] sm:$0xff] %vm1103, %v1095
    %1135 = vst.msk [vmem:[#allocation8 + $0xf8] sm:$0xff] %vm1103, %v1100
    // Predicated region
    $region26: #{tpu_custom_call.1} parent=1 // pred_check
      _
    $region27: #{tpu_custom_call.1} parent=1 // pred_check_branch
      %1137 = sbr.rel (0) target = $region29
    $region28: #{tpu_custom_call.1} parent=1 // pred_region
      %s1139 = ssub.s32 4096, 4096
      %1140 = vsyncadd [#allocation4], %s1139
      %s1141 = sshll.u32 [#allocation8], 4
      %s1142 = int_to_ptr.vmem [resolvable:$true] %s1141
      %1147 = dma.vmem_to_hbm [thread:$0]  %s1142, 4096, %s3, [#allocation4], 128, 128, 8
    $region29: #{tpu_custom_call.1} parent=1 // pred_fallthru
      _
    // Predicated region
    $region30: #{tpu_custom_call.1} parent=1 // pred_check
      _
    $region31: #{tpu_custom_call.1} parent=1 // pred_check_branch
      %1149 = sbr.rel (0) target = $region33
    $region32: #{tpu_custom_call.1} parent=1 // pred_region
      %1150 = dma.done [#allocation4], 4096
    $region33: #{tpu_custom_call.1} parent=1 // pred_fallthru
      _
    %1151 = vsyncpa [#allocation3], 1
    %1152 = vsyncpa [#allocation6], 1
    %1153 = vsyncpa [#allocation4], 1

// kernel: tpu_custom_call.1
$region0: #{tpu_custom_call.1}
  #allocation0 [shape = 'u32[]', space=smem, size = 0x4, offset = 0x4, fixed_abs, tag = 'smem constant byte address 0x4 - core index']
  #allocation1 [shape = 'u32[144,128]{1,0:T(1,128)}', space=vmem, size = 0x12000, scoped, tag = 'internal scratch']
  %s0 = inlined_call_operand.hbm [shape: f32[16,32], index: 0, kind: input, shape index: {}]
  %s1 = inlined_call_operand.hbm [shape: f32[8,16,16], index: 1, kind: input, shape index: {}]
  %s2 = inlined_call_operand.hbm [shape: f32[16,32], index: 2, kind: input, shape index: {}]
  %s3 = inlined_call_operand.hbm [shape: f32[8,32,32], index: 3, kind: output, shape index: {}]
  %s4 = sld [smem:[#allocation0]]
  $region34: #{tpu_custom_call.1} parent=0
    _
  %s6 = ssub.s32 1, %s4
  %s7 = scalar_select 0, %s6, %s4
  $region1: #{tpu_custom_call.1} parent=0
    #allocation2 [shape = 'u8[8192]{0}', space=vmem, size = 0x2000, scoped, tag = 'input window, operand 0, single buffered']
    #allocation3 [shape = 's32[1]{0}', space=sflag, size = 0x4, scoped, tag = 'scoped memory for tpu_custom_call.1']
    #allocation4 [shape = 's32[1]{0}', space=sflag, size = 0x4, scoped, tag = 'scoped memory for tpu_custom_call.1']
    #allocation5 [shape = 'u8[65536]{0}', space=vmem, size = 0x10000, scoped, tag = 'input window, operand 1, single buffered']
    #allocation6 [shape = 's32[1]{0}', space=sflag, size = 0x4, scoped, tag = 'scoped memory for tpu_custom_call.1']
    #allocation7 [shape = 'u8[8192]{0}', space=vmem, size = 0x2000, scoped, tag = 'input window, operand 2, single buffered']
    #allocation8 [shape = 'u8[131072]{0}', space=vmem, size = 0x20000, scoped, tag = 'output window, operand 0, single buffered']
    %8 = vsyncpa [#allocation3], 0
    %9 = vsyncpa [#allocation6], 0
    %10 = vsyncpa [#allocation4], 0
    // Predicated region
    $region2: #{tpu_custom_call.1} parent=1 // pred_check
      _
    $region3: #{tpu_custom_call.1} parent=1 // pred_check_branch
      %12 = sbr.rel (0) target = $region5
    $region4: #{tpu_custom_call.1} parent=1 // pred_region
      %s14 = ssub.s32 256, 256
      %15 = vsyncadd [#allocation3], %s14
      %s16 = sshll.u32 [#allocation2], 4
      %s17 = int_to_ptr.vmem [resolvable:$true] %s16
      %22 = dma.hbm_to_vmem [thread:$0]  %s0, 256, %s17, [#allocation3], 128, 128, 8
    $region5: #{tpu_custom_call.1} parent=1 // pred_fallthru
      _
    // Predicated region
    $region6: #{tpu_custom_call.1} parent=1 // pred_check
      _
    $region7: #{tpu_custom_call.1} parent=1 // pred_check_branch
      %24 = sbr.rel (0) target = $region9
    $region8: #{tpu_custom_call.1} parent=1 // pred_region
      %s26 = ssub.s32 2048, 2048
      %27 = vsyncadd [#allocation6], %s26
      %s28 = sshll.u32 [#allocation5], 4
      %s29 = int_to_ptr.vmem [resolvable:$true] %s28
      %34 = dma.hbm_to_vmem [thread:$0]  %s1, 2048, %s29, [#allocation6], 128, 128, 8
    $region9: #{tpu_custom_call.1} parent=1 // pred_fallthru
      _
    // Predicated region
    $region10: #{tpu_custom_call.1} parent=1 // pred_check
      _
    $region11: #{tpu_custom_call.1} parent=1 // pred_check_branch
      %36 = sbr.rel (0) target = $region13
    $region12: #{tpu_custom_call.1} parent=1 // pred_region
      %s38 = ssub.s32 256, 256
      %39 = vsyncadd [#allocation6], %s38
      %s40 = sshll.u32 [#allocation7], 4
      %s41 = int_to_ptr.vmem [resolvable:$true] %s40
      %46 = dma.hbm_to_vmem [thread:$0]  %s2, 256, %s41, [#allocation6], 128, 128, 8
    $region13: #{tpu_custom_call.1} parent=1 // pred_fallthru
      _
    // Predicated region
    $region14: #{tpu_custom_call.1} parent=1 // pred_check
      _
    $region15: #{tpu_custom_call.1} parent=1 // pred_check_branch
      %48 = sbr.rel (0) target = $region17
    $region16: #{tpu_custom_call.1} parent=1 // pred_region
      %49 = dma.done [#allocation3], 256
    $region17: #{tpu_custom_call.1} parent=1 // pred_fallthru
      _
    // Predicated region
    $region18: #{tpu_custom_call.1} parent=1 // pred_check
      _
    $region19: #{tpu_custom_call.1} parent=1 // pred_check_branch
      %51 = sbr.rel (0) target = $region21
    $region20: #{tpu_custom_call.1} parent=1 // pred_region
      %52 = dma.done [#allocation6], 2048
    $region21: #{tpu_custom_call.1} parent=1 // pred_fallthru
      _
    // Predicated region
    $region22: #{tpu_custom_call.1} parent=1 // pred_check
      _
    $region23: #{tpu_custom_call.1} parent=1 // pred_check_branch
      %54 = sbr.rel (0) target = $region25
    $region24: #{tpu_custom_call.1} parent=1 // pred_region
      %55 = dma.done [#allocation6], 256
    $region25: #{tpu_custom_call.1} parent=1 // pred_fallthru
      _
    %v56 = vld [vmem:[#allocation5] sm:$0xff]
    %v57 = vld [vmem:[#allocation5 + $0x8] sm:$0xff]
    %v58 = vld [vmem:[#allocation5 + $0x10] sm:$0xff]
    %v59 = vld [vmem:[#allocation5 + $0x18] sm:$0xff]
    %v60 = vld [vmem:[#allocation5 + $0x20] sm:$0xff]
    %v61 = vld [vmem:[#allocation5 + $0x28] sm:$0xff]
    %v62 = vld [vmem:[#allocation5 + $0x30] sm:$0xff]
    %v63 = vld [vmem:[#allocation5 + $0x38] sm:$0xff]
    %v64 = vld [vmem:[#allocation5 + $0x40] sm:$0xff]
    %v65 = vld [vmem:[#allocation5 + $0x48] sm:$0xff]
    %v66 = vld [vmem:[#allocation5 + $0x50] sm:$0xff]
    %v67 = vld [vmem:[#allocation5 + $0x58] sm:$0xff]
    %v68 = vld [vmem:[#allocation5 + $0x60] sm:$0xff]
    %v69 = vld [vmem:[#allocation5 + $0x68] sm:$0xff]
    %v70 = vld [vmem:[#allocation5 + $0x70] sm:$0xff]
    %v71 = vld [vmem:[#allocation5 + $0x78] sm:$0xff]
    %v72 = vld [vmem:[#allocation2] sm:$0xff]
    %v73 = vld [vmem:[#allocation2 + $0x8] sm:$0xff]
    %v74 = vld [vmem:[#allocation7] sm:$0xff]
    %v75 = vld [vmem:[#allocation7 + $0x8] sm:$0xff]
    %76 = vxpose.xlu0.b32.start [1/16] %v72, 128
    %77 = vxpose.xlu0.b32.cont [2/16] %v73, 128
    %78 = vxpose.xlu0.b32.cont [3/16] 0.0, 128
    %79 = vxpose.xlu0.b32.cont [4/16] 0.0, 128
    %80 = vxpose.xlu0.b32.cont [5/16] 0.0, 128
    %81 = vxpose.xlu0.b32.cont [6/16] 0.0, 128
    %82 = vxpose.xlu0.b32.cont [7/16] 0.0, 128
    %83 = vxpose.xlu0.b32.cont [8/16] 0.0, 128
    %84 = vxpose.xlu0.b32.cont [9/16] 0.0, 128
    %85 = vxpose.xlu0.b32.cont [10/16] 0.0, 128
    %86 = vxpose.xlu0.b32.cont [11/16] 0.0, 128
    %87 = vxpose.xlu0.b32.cont [12/16] 0.0, 128
    %88 = vxpose.xlu0.b32.cont [13/16] 0.0, 128
    %89 = vxpose.xlu0.b32.cont [14/16] 0.0, 128
    %90 = vxpose.xlu0.b32.cont [15/16] 0.0, 128
    %91 = vxpose.xlu0.b32.end [16/16] 0.0, 128
    %v92 = vpop.trf.xlu0
    %v93 = vpop.trf.xlu0
    %v94 = vpop.trf.xlu0
    %v95 = vpop.trf.xlu0
    %v96 = vpop.trf.xlu0
    %v97 = vpop.trf.xlu0
    %v98 = vpop.trf.xlu0
    %v99 = vpop.trf.xlu0
    %v100 = vpop.trf.xlu0
    %v101 = vpop.trf.xlu0
    %v102 = vpop.trf.xlu0
    %v103 = vpop.trf.xlu0
    %v104 = vpop.trf.xlu0
    %v105 = vpop.trf.xlu0
    %v106 = vpop.trf.xlu0
    %v107 = vpop.trf.xlu0
    %vm108 = vcmask 130048
    %v110 = vsel %vm108, %v92, 0
    %v113 = vsel %vm108, %v93, 0
    %v116 = vsel %vm108, %v94, 0
    %v119 = vsel %vm108, %v95, 0
    %121 = vmatprep.subr.mxu0 0.0
    %122 = vmatpush1.msra.mxu0 %v56
    %123 = vmatprep.subr.mxu0 0.0
    %124 = vmatpush1.msra.mxu0 %v57
    %125 = vmatprep.subr.mxu0 0.0
    %126 = vmatpush1.msra.mxu0 0.0
    %127 = vmatprep.subr.mxu0 0.0
    %128 = vmatpush1.msra.mxu0 0.0
    %129 = vmatprep.subr.mxu0 0.0
    %130 = vmatpush1.msra.mxu0 0.0
    %131 = vmatprep.subr.mxu0 0.0
    %132 = vmatpush1.msra.mxu0 0.0
    %133 = vmatprep.subr.mxu0 0.0
    %134 = vmatpush1.msra.mxu0 0.0
    %135 = vmatprep.subr.mxu0 0.0
    %136 = vmatpush1.msra.mxu0 0.0
    %137 = vmatprep.subr.mxu0 0.0
    %138 = vmatpush1.msra.mxu0 0.0
    %139 = vmatprep.subr.mxu0 0.0
    %140 = vmatpush1.msra.mxu0 0.0
    %141 = vmatprep.subr.mxu0 0.0
    %142 = vmatpush1.msra.mxu0 0.0
    %143 = vmatprep.subr.mxu0 0.0
    %144 = vmatpush1.msra.mxu0 0.0
    %145 = vmatprep.subr.mxu0 0.0
    %146 = vmatpush1.msra.mxu0 0.0
    %147 = vmatprep.subr.mxu0 0.0
    %148 = vmatpush1.msra.mxu0 0.0
    %149 = vmatprep.subr.mxu0 0.0
    %150 = vmatpush1.msra.mxu0 0.0
    %151 = vmatprep.subr.mxu0 0.0
    %152 = vmatpush1.msra.mxu0 0.0
    %153 = vmatprep.subr.mxu0 0.0
    %154 = vmatpush1.msra.mxu0 0.0
    %155 = vmatprep.subr.mxu0 0.0
    %156 = vmatpush1.msra.mxu0 0.0
    %157 = vmatprep.subr.mxu0 0.0
    %158 = vmatpush1.msra.mxu0 0.0
    %159 = vmatprep.subr.mxu0 0.0
    %160 = vmatpush1.msra.mxu0 0.0
    %161 = vmatprep.subr.mxu0 0.0
    %162 = vmatpush1.msra.mxu0 0.0
    %163 = vmatprep.subr.mxu0 0.0
    %164 = vmatpush1.msra.mxu0 0.0
    %165 = vmatprep.subr.mxu0 0.0
    %166 = vmatpush1.msra.mxu0 0.0
    %167 = vmatprep.subr.mxu0 0.0
    %168 = vmatpush1.msra.mxu0 0.0
    %169 = vmatprep.subr.mxu0 0.0
    %170 = vmatpush1.msra.mxu0 0.0
    %171 = vmatprep.subr.mxu0 0.0
    %172 = vmatpush1.msra.mxu0 0.0
    %173 = vmatprep.subr.mxu0 0.0
    %174 = vmatpush1.msra.mxu0 0.0
    %175 = vmatprep.subr.mxu0 0.0
    %176 = vmatpush1.msra.mxu0 0.0
    %177 = vmatprep.subr.mxu0 0.0
    %178 = vmatpush1.msra.mxu0 0.0
    %179 = vmatprep.subr.mxu0 0.0
    %180 = vmatpush1.msra.mxu0 0.0
    %181 = vmatprep.subr.mxu0 0.0
    %182 = vmatpush1.msra.mxu0 0.0
    %183 = vmatprep.subr.mxu0 0.0
    %184 = vmatpush1.msra.mxu0 0.0
    %185 = vmatprep.mubr.f32.mxu0 0.0
    %186 = vmatmul.mubr.f32.gmra.mrb[0].mxu0 %v110
    %v187 = vpop.f32.mrb[0].mxu0
    %v188 = vadd.f32 0.0, %v187
    %v189 = vpop.f32.mrb[0].mxu0
    %190 = vmatprep.mubr.f32.mxu0 0.0
    %191 = vmatmul.mubr.f32.gmra.mrb[0].mxu0 %v113
    %v192 = vpop.f32.mrb[0].mxu0
    %v193 = vadd.f32 0.0, %v192
    %v194 = vpop.f32.mrb[0].mxu0
    %195 = vmatprep.mubr.f32.mxu0 0.0
    %196 = vmatmul.mubr.f32.gmra.mrb[0].mxu0 %v116
    %v197 = vpop.f32.mrb[0].mxu0
    %v198 = vadd.f32 0.0, %v197
    %v199 = vpop.f32.mrb[0].mxu0
    %200 = vmatprep.mubr.f32.mxu0 0.0
    %201 = vmatmul.mubr.f32.gmra.mrb[0].mxu0 %v119
    %v202 = vpop.f32.mrb[0].mxu0
    %v203 = vadd.f32 0.0, %v202
    %v204 = vpop.f32.mrb[0].mxu0
    %205 = vdwg.mxu0
    %206 = vmatprep.subr.mxu0 0.0
    %207 = vmatpush1.msra.mxu0 %v58
    %208 = vmatprep.subr.mxu0 0.0
    %209 = vmatpush1.msra.mxu0 %v59
    %210 = vmatprep.subr.mxu0 0.0
    %211 = vmatpush1.msra.mxu0 0.0
    %212 = vmatprep.subr.mxu0 0.0
    %213 = vmatpush1.msra.mxu0 0.0
    %214 = vmatprep.subr.mxu0 0.0
    %215 = vmatpush1.msra.mxu0 0.0
    %216 = vmatprep.subr.mxu0 0.0
    %217 = vmatpush1.msra.mxu0 0.0
    %218 = vmatprep.subr.mxu0 0.0
    %219 = vmatpush1.msra.mxu0 0.0
    %220 = vmatprep.subr.mxu0 0.0
    %221 = vmatpush1.msra.mxu0 0.0
    %222 = vmatprep.subr.mxu0 0.0
    %223 = vmatpush1.msra.mxu0 0.0
    %224 = vmatprep.subr.mxu0 0.0
    %225 = vmatpush1.msra.mxu0 0.0
    %226 = vmatprep.subr.mxu0 0.0
    %227 = vmatpush1.msra.mxu0 0.0
    %228 = vmatprep.subr.mxu0 0.0
    %229 = vmatpush1.msra.mxu0 0.0
    %230 = vmatprep.subr.mxu0 0.0
    %231 = vmatpush1.msra.mxu0 0.0
    %232 = vmatprep.subr.mxu0 0.0
    %233 = vmatpush1.msra.mxu0 0.0
    %234 = vmatprep.subr.mxu0 0.0
    %235 = vmatpush1.msra.mxu0 0.0
    %236 = vmatprep.subr.mxu0 0.0
    %237 = vmatpush1.msra.mxu0 0.0
    %238 = vmatprep.subr.mxu0 0.0
    %239 = vmatpush1.msra.mxu0 0.0
    %240 = vmatprep.subr.mxu0 0.0
    %241 = vmatpush1.msra.mxu0 0.0
    %242 = vmatprep.subr.mxu0 0.0
    %243 = vmatpush1.msra.mxu0 0.0
    %244 = vmatprep.subr.mxu0 0.0
    %245 = vmatpush1.msra.mxu0 0.0
    %246 = vmatprep.subr.mxu0 0.0
    %247 = vmatpush1.msra.mxu0 0.0
    %248 = vmatprep.subr.mxu0 0.0
    %249 = vmatpush1.msra.mxu0 0.0
    %250 = vmatprep.subr.mxu0 0.0
    %251 = vmatpush1.msra.mxu0 0.0
    %252 = vmatprep.subr.mxu0 0.0
    %253 = vmatpush1.msra.mxu0 0.0
    %254 = vmatprep.subr.mxu0 0.0
    %255 = vmatpush1.msra.mxu0 0.0
    %256 = vmatprep.subr.mxu0 0.0
    %257 = vmatpush1.msra.mxu0 0.0
    %258 = vmatprep.subr.mxu0 0.0
    %259 = vmatpush1.msra.mxu0 0.0
    %260 = vmatprep.subr.mxu0 0.0
    %261 = vmatpush1.msra.mxu0 0.0
    %262 = vmatprep.subr.mxu0 0.0
    %263 = vmatpush1.msra.mxu0 0.0
    %264 = vmatprep.subr.mxu0 0.0
    %265 = vmatpush1.msra.mxu0 0.0
    %266 = vmatprep.subr.mxu0 0.0
    %267 = vmatpush1.msra.mxu0 0.0
    %268 = vmatprep.subr.mxu0 0.0
    %269 = vmatpush1.msra.mxu0 0.0
    %270 = vmatprep.mubr.f32.mxu0 0.0
    %271 = vmatmul.mubr.f32.gmra.mrb[0].mxu0 %v110
    %v272 = vpop.f32.mrb[0].mxu0
    %v273 = vadd.f32 0.0, %v272
    %v274 = vpop.f32.mrb[0].mxu0
    %275 = vmatprep.mubr.f32.mxu0 0.0
    %276 = vmatmul.mubr.f32.gmra.mrb[0].mxu0 %v113
    %v277 = vpop.f32.mrb[0].mxu0
    %v278 = vadd.f32 0.0, %v277
    %v279 = vpop.f32.mrb[0].mxu0
    %280 = vmatprep.mubr.f32.mxu0 0.0
    %281 = vmatmul.mubr.f32.gmra.mrb[0].mxu0 %v116
    %v282 = vpop.f32.mrb[0].mxu0
    %v283 = vadd.f32 0.0, %v282
    %v284 = vpop.f32.mrb[0].mxu0
    %285 = vmatprep.mubr.f32.mxu0 0.0
    %286 = vmatmul.mubr.f32.gmra.mrb[0].mxu0 %v119
    %v287 = vpop.f32.mrb[0].mxu0
    %v288 = vadd.f32 0.0, %v287
    %v289 = vpop.f32.mrb[0].mxu0
    %290 = vdwg.mxu0
    %291 = vmatprep.subr.mxu0 0.0
    %292 = vmatpush1.msra.mxu0 %v60
    %293 = vmatprep.subr.mxu0 0.0
    %294 = vmatpush1.msra.mxu0 %v61
    %295 = vmatprep.subr.mxu0 0.0
    %296 = vmatpush1.msra.mxu0 0.0
    %297 = vmatprep.subr.mxu0 0.0
    %298 = vmatpush1.msra.mxu0 0.0
    %299 = vmatprep.subr.mxu0 0.0
    %300 = vmatpush1.msra.mxu0 0.0
    %301 = vmatprep.subr.mxu0 0.0
    %302 = vmatpush1.msra.mxu0 0.0
    %303 = vmatprep.subr.mxu0 0.0
    %304 = vmatpush1.msra.mxu0 0.0
    %305 = vmatprep.subr.mxu0 0.0
    %306 = vmatpush1.msra.mxu0 0.0
    %307 = vmatprep.subr.mxu0 0.0
    %308 = vmatpush1.msra.mxu0 0.0
    %309 = vmatprep.subr.mxu0 0.0
    %310 = vmatpush1.msra.mxu0 0.0
    %311 = vmatprep.subr.mxu0 0.0
    %312 = vmatpush1.msra.mxu0 0.0
    %313 = vmatprep.subr.mxu0 0.0
    %314 = vmatpush1.msra.mxu0 0.0
    %315 = vmatprep.subr.mxu0 0.0
    %316 = vmatpush1.msra.mxu0 0.0
    %317 = vmatprep.subr.mxu0 0.0
    %318 = vmatpush1.msra.mxu0 0.0
    %319 = vmatprep.subr.mxu0 0.0
    %320 = vmatpush1.msra.mxu0 0.0
    %321 = vmatprep.subr.mxu0 0.0
    %322 = vmatpush1.msra.mxu0 0.0
    %323 = vmatprep.subr.mxu0 0.0
    %324 = vmatpush1.msra.mxu0 0.0
    %325 = vmatprep.subr.mxu0 0.0
    %326 = vmatpush1.msra.mxu0 0.0
    %327 = vmatprep.subr.mxu0 0.0
    %328 = vmatpush1.msra.mxu0 0.0
    %329 = vmatprep.subr.mxu0 0.0
    %330 = vmatpush1.msra.mxu0 0.0
    %331 = vmatprep.subr.mxu0 0.0
    %332 = vmatpush1.msra.mxu0 0.0
    %333 = vmatprep.subr.mxu0 0.0
    %334 = vmatpush1.msra.mxu0 0.0
    %335 = vmatprep.subr.mxu0 0.0
    %336 = vmatpush1.msra.mxu0 0.0
    %337 = vmatprep.subr.mxu0 0.0
    %338 = vmatpush1.msra.mxu0 0.0
    %339 = vmatprep.subr.mxu0 0.0
    %340 = vmatpush1.msra.mxu0 0.0
    %341 = vmatprep.subr.mxu0 0.0
    %342 = vmatpush1.msra.mxu0 0.0
    %343 = vmatprep.subr.mxu0 0.0
    %344 = vmatpush1.msra.mxu0 0.0
    %345 = vmatprep.subr.mxu0 0.0
    %346 = vmatpush1.msra.mxu0 0.0
    %347 = vmatprep.subr.mxu0 0.0
    %348 = vmatpush1.msra.mxu0 0.0
    %349 = vmatprep.subr.mxu0 0.0
    %350 = vmatpush1.msra.mxu0 0.0
    %351 = vmatprep.subr.mxu0 0.0
    %352 = vmatpush1.msra.mxu0 0.0
    %353 = vmatprep.subr.mxu0 0.0
    %354 = vmatpush1.msra.mxu0 0.0
    %355 = vmatprep.mubr.f32.mxu0 0.0
    %356 = vmatmul.mubr.f32.gmra.mrb[0].mxu0 %v110
    %v357 = vpop.f32.mrb[0].mxu0
    %v358 = vadd.f32 0.0, %v357
    %v359 = vpop.f32.mrb[0].mxu0
    %360 = vmatprep.mubr.f32.mxu0 0.0
    %361 = vmatmul.mubr.f32.gmra.mrb[0].mxu0 %v113
    %v362 = vpop.f32.mrb[0].mxu0
    %v363 = vadd.f32 0.0, %v362
    %v364 = vpop.f32.mrb[0].mxu0
    %365 = vmatprep.mubr.f32.mxu0 0.0
    %366 = vmatmul.mubr.f32.gmra.mrb[0].mxu0 %v116
    %v367 = vpop.f32.mrb[0].mxu0
    %v368 = vadd.f32 0.0, %v367
    %v369 = vpop.f32.mrb[0].mxu0
    %370 = vmatprep.mubr.f32.mxu0 0.0
    %371 = vmatmul.mubr.f32.gmra.mrb[0].mxu0 %v119
    %v372 = vpop.f32.mrb[0].mxu0
    %v373 = vadd.f32 0.0, %v372
    %v374 = vpop.f32.mrb[0].mxu0
    %375 = vdwg.mxu0
    %376 = vmatprep.subr.mxu0 0.0
    %377 = vmatpush1.msra.mxu0 %v62
    %378 = vmatprep.subr.mxu0 0.0
    %379 = vmatpush1.msra.mxu0 %v63
    %380 = vmatprep.subr.mxu0 0.0
    %381 = vmatpush1.msra.mxu0 0.0
    %382 = vmatprep.subr.mxu0 0.0
    %383 = vmatpush1.msra.mxu0 0.0
    %384 = vmatprep.subr.mxu0 0.0
    %385 = vmatpush1.msra.mxu0 0.0
    %386 = vmatprep.subr.mxu0 0.0
    %387 = vmatpush1.msra.mxu0 0.0
    %388 = vmatprep.subr.mxu0 0.0
    %389 = vmatpush1.msra.mxu0 0.0
    %390 = vmatprep.subr.mxu0 0.0
    %391 = vmatpush1.msra.mxu0 0.0
    %392 = vmatprep.subr.mxu0 0.0
    %393 = vmatpush1.msra.mxu0 0.0
    %394 = vmatprep.subr.mxu0 0.0
    %395 = vmatpush1.msra.mxu0 0.0
    %396 = vmatprep.subr.mxu0 0.0
    %397 = vmatpush1.msra.mxu0 0.0
    %398 = vmatprep.subr.mxu0 0.0
    %399 = vmatpush1.msra.mxu0 0.0
    %400 = vmatprep.subr.mxu0 0.0
    %401 = vmatpush1.msra.mxu0 0.0
    %402 = vmatprep.subr.mxu0 0.0
    %403 = vmatpush1.msra.mxu0 0.0
    %404 = vmatprep.subr.mxu0 0.0
    %405 = vmatpush1.msra.mxu0 0.0
    %406 = vmatprep.subr.mxu0 0.0
    %407 = vmatpush1.msra.mxu0 0.0
    %408 = vmatprep.subr.mxu0 0.0
    %409 = vmatpush1.msra.mxu0 0.0
    %410 = vmatprep.subr.mxu0 0.0
    %411 = vmatpush1.msra.mxu0 0.0
    %412 = vmatprep.subr.mxu0 0.0
    %413 = vmatpush1.msra.mxu0 0.0
    %414 = vmatprep.subr.mxu0 0.0
    %415 = vmatpush1.msra.mxu0 0.0
    %416 = vmatprep.subr.mxu0 0.0
    %417 = vmatpush1.msra.mxu0 0.0
    %418 = vmatprep.subr.mxu0 0.0
    %419 = vmatpush1.msra.mxu0 0.0
    %420 = vmatprep.subr.mxu0 0.0
    %421 = vmatpush1.msra.mxu0 0.0
    %422 = vmatprep.subr.mxu0 0.0
    %423 = vmatpush1.msra.mxu0 0.0
    %424 = vmatprep.subr.mxu0 0.0
    %425 = vmatpush1.msra.mxu0 0.0
    %426 = vmatprep.subr.mxu0 0.0
    %427 = vmatpush1.msra.mxu0 0.0
    %428 = vmatprep.subr.mxu0 0.0
    %429 = vmatpush1.msra.mxu0 0.0
    %430 = vmatprep.subr.mxu0 0.0
    %431 = vmatpush1.msra.mxu0 0.0
    %432 = vmatprep.subr.mxu0 0.0
    %433 = vmatpush1.msra.mxu0 0.0
    %434 = vmatprep.subr.mxu0 0.0
    %435 = vmatpush1.msra.mxu0 0.0
    %436 = vmatprep.subr.mxu0 0.0
    %437 = vmatpush1.msra.mxu0 0.0
    %438 = vmatprep.subr.mxu0 0.0
    %439 = vmatpush1.msra.mxu0 0.0
    %440 = vmatprep.mubr.f32.mxu0 0.0
    %441 = vmatmul.mubr.f32.gmra.mrb[0].mxu0 %v110
    %v442 = vpop.f32.mrb[0].mxu0
    %v443 = vadd.f32 0.0, %v442
    %v444 = vpop.f32.mrb[0].mxu0
    %445 = vmatprep.mubr.f32.mxu0 0.0
    %446 = vmatmul.mubr.f32.gmra.mrb[0].mxu0 %v113
    %v447 = vpop.f32.mrb[0].mxu0
    %v448 = vadd.f32 0.0, %v447
    %v449 = vpop.f32.mrb[0].mxu0
    %450 = vmatprep.mubr.f32.mxu0 0.0
    %451 = vmatmul.mubr.f32.gmra.mrb[0].mxu0 %v116
    %v452 = vpop.f32.mrb[0].mxu0
    %v453 = vadd.f32 0.0, %v452
    %v454 = vpop.f32.mrb[0].mxu0
    %455 = vmatprep.mubr.f32.mxu0 0.0
    %456 = vmatmul.mubr.f32.gmra.mrb[0].mxu0 %v119
    %v457 = vpop.f32.mrb[0].mxu0
    %v458 = vadd.f32 0.0, %v457
    %v459 = vpop.f32.mrb[0].mxu0
    %460 = vdwg.mxu0
    %461 = vmatprep.subr.mxu0 0.0
    %462 = vmatpush1.msra.mxu0 %v64
    %463 = vmatprep.subr.mxu0 0.0
    %464 = vmatpush1.msra.mxu0 %v65
    %465 = vmatprep.subr.mxu0 0.0
    %466 = vmatpush1.msra.mxu0 0.0
    %467 = vmatprep.subr.mxu0 0.0
    %468 = vmatpush1.msra.mxu0 0.0
    %469 = vmatprep.subr.mxu0 0.0
    %470 = vmatpush1.msra.mxu0 0.0
    %471 = vmatprep.subr.mxu0 0.0
    %472 = vmatpush1.msra.mxu0 0.0
    %473 = vmatprep.subr.mxu0 0.0
    %474 = vmatpush1.msra.mxu0 0.0
    %475 = vmatprep.subr.mxu0 0.0
    %476 = vmatpush1.msra.mxu0 0.0
    %477 = vmatprep.subr.mxu0 0.0
    %478 = vmatpush1.msra.mxu0 0.0
    %479 = vmatprep.subr.mxu0 0.0
    %480 = vmatpush1.msra.mxu0 0.0
    %481 = vmatprep.subr.mxu0 0.0
    %482 = vmatpush1.msra.mxu0 0.0
    %483 = vmatprep.subr.mxu0 0.0
    %484 = vmatpush1.msra.mxu0 0.0
    %485 = vmatprep.subr.mxu0 0.0
    %486 = vmatpush1.msra.mxu0 0.0
    %487 = vmatprep.subr.mxu0 0.0
    %488 = vmatpush1.msra.mxu0 0.0
    %489 = vmatprep.subr.mxu0 0.0
    %490 = vmatpush1.msra.mxu0 0.0
    %491 = vmatprep.subr.mxu0 0.0
    %492 = vmatpush1.msra.mxu0 0.0
    %493 = vmatprep.subr.mxu0 0.0
    %494 = vmatpush1.msra.mxu0 0.0
    %495 = vmatprep.subr.mxu0 0.0
    %496 = vmatpush1.msra.mxu0 0.0
    %497 = vmatprep.subr.mxu0 0.0
    %498 = vmatpush1.msra.mxu0 0.0
    %499 = vmatprep.subr.mxu0 0.0
    %500 = vmatpush1.msra.mxu0 0.0
    %501 = vmatprep.subr.mxu0 0.0
    %502 = vmatpush1.msra.mxu0 0.0
    %503 = vmatprep.subr.mxu0 0.0
    %504 = vmatpush1.msra.mxu0 0.0
    %505 = vmatprep.subr.mxu0 0.0
    %506 = vmatpush1.msra.mxu0 0.0
    %507 = vmatprep.subr.mxu0 0.0
    %508 = vmatpush1.msra.mxu0 0.0
    %509 = vmatprep.subr.mxu0 0.0
    %510 = vmatpush1.msra.mxu0 0.0
    %511 = vmatprep.subr.mxu0 0.0
    %512 = vmatpush1.msra.mxu0 0.0
    %513 = vmatprep.subr.mxu0 0.0
    %514 = vmatpush1.msra.mxu0 0.0
    %515 = vmatprep.subr.mxu0 0.0
    %516 = vmatpush1.msra.mxu0 0.0
    %517 = vmatprep.subr.mxu0 0.0
    %518 = vmatpush1.msra.mxu0 0.0
    %519 = vmatprep.subr.mxu0 0.0
    %520 = vmatpush1.msra.mxu0 0.0
    %521 = vmatprep.subr.mxu0 0.0
    %522 = vmatpush1.msra.mxu0 0.0
    %523 = vmatprep.subr.mxu0 0.0
    %524 = vmatpush1.msra.mxu0 0.0
    %525 = vmatprep.mubr.f32.mxu0 0.0
    %526 = vmatmul.mubr.f32.gmra.mrb[0].mxu0 %v110
    %v527 = vpop.f32.mrb[0].mxu0
    %v528 = vadd.f32 0.0, %v527
    %v529 = vpop.f32.mrb[0].mxu0
    %530 = vmatprep.mubr.f32.mxu0 0.0
    %531 = vmatmul.mubr.f32.gmra.mrb[0].mxu0 %v113
    %v532 = vpop.f32.mrb[0].mxu0
    %v533 = vadd.f32 0.0, %v532
    %v534 = vpop.f32.mrb[0].mxu0
    %535 = vmatprep.mubr.f32.mxu0 0.0
    %536 = vmatmul.mubr.f32.gmra.mrb[0].mxu0 %v116
    %v537 = vpop.f32.mrb[0].mxu0
    %v538 = vadd.f32 0.0, %v537
    %v539 = vpop.f32.mrb[0].mxu0
    %540 = vmatprep.mubr.f32.mxu0 0.0
    %541 = vmatmul.mubr.f32.gmra.mrb[0].mxu0 %v119
    %v542 = vpop.f32.mrb[0].mxu0
    %v543 = vadd.f32 0.0, %v542
    %v544 = vpop.f32.mrb[0].mxu0
    %545 = vdwg.mxu0
    %546 = vmatprep.subr.mxu0 0.0
    %547 = vmatpush1.msra.mxu0 %v66
    %548 = vmatprep.subr.mxu0 0.0
    %549 = vmatpush1.msra.mxu0 %v67
    %550 = vmatprep.subr.mxu0 0.0
    %551 = vmatpush1.msra.mxu0 0.0
    %552 = vmatprep.subr.mxu0 0.0
    %553 = vmatpush1.msra.mxu0 0.0
    %554 = vmatprep.subr.mxu0 0.0
    %555 = vmatpush1.msra.mxu0 0.0
    %556 = vmatprep.subr.mxu0 0.0
    %557 = vmatpush1.msra.mxu0 0.0
    %558 = vmatprep.subr.mxu0 0.0
    %559 = vmatpush1.msra.mxu0 0.0
    %560 = vmatprep.subr.mxu0 0.0
    %561 = vmatpush1.msra.mxu0 0.0
    %562 = vmatprep.subr.mxu0 0.0
    %563 = vmatpush1.msra.mxu0 0.0
    %564 = vmatprep.subr.mxu0 0.0
    %565 = vmatpush1.msra.mxu0 0.0
    %566 = vmatprep.subr.mxu0 0.0
    %567 = vmatpush1.msra.mxu0 0.0
    %568 = vmatprep.subr.mxu0 0.0
    %569 = vmatpush1.msra.mxu0 0.0
    %570 = vmatprep.subr.mxu0 0.0
    %571 = vmatpush1.msra.mxu0 0.0
    %572 = vmatprep.subr.mxu0 0.0
    %573 = vmatpush1.msra.mxu0 0.0
    %574 = vmatprep.subr.mxu0 0.0
    %575 = vmatpush1.msra.mxu0 0.0
    %576 = vmatprep.subr.mxu0 0.0
    %577 = vmatpush1.msra.mxu0 0.0
    %578 = vmatprep.subr.mxu0 0.0
    %579 = vmatpush1.msra.mxu0 0.0
    %580 = vmatprep.subr.mxu0 0.0
    %581 = vmatpush1.msra.mxu0 0.0
    %582 = vmatprep.subr.mxu0 0.0
    %583 = vmatpush1.msra.mxu0 0.0
    %584 = vmatprep.subr.mxu0 0.0
    %585 = vmatpush1.msra.mxu0 0.0
    %586 = vmatprep.subr.mxu0 0.0
    %587 = vmatpush1.msra.mxu0 0.0
    %588 = vmatprep.subr.mxu0 0.0
    %589 = vmatpush1.msra.mxu0 0.0
    %590 = vmatprep.subr.mxu0 0.0
    %591 = vmatpush1.msra.mxu0 0.0
    %592 = vmatprep.subr.mxu0 0.0
    %593 = vmatpush1.msra.mxu0 0.0
    %594 = vmatprep.subr.mxu0 0.0
    %595 = vmatpush1.msra.mxu0 0.0
    %596 = vmatprep.subr.mxu0 0.0
    %597 = vmatpush1.msra.mxu0 0.0
    %598 = vmatprep.subr.mxu0 0.0
    %599 = vmatpush1.msra.mxu0 0.0
    %600 = vmatprep.subr.mxu0 0.0
    %601 = vmatpush1.msra.mxu0 0.0
    %602 = vmatprep.subr.mxu0 0.0
    %603 = vmatpush1.msra.mxu0 0.0
    %604 = vmatprep.subr.mxu0 0.0
    %605 = vmatpush1.msra.mxu0 0.0
    %606 = vmatprep.subr.mxu0 0.0
    %607 = vmatpush1.msra.mxu0 0.0
    %608 = vmatprep.subr.mxu0 0.0
    %609 = vmatpush1.msra.mxu0 0.0
    %610 = vmatprep.mubr.f32.mxu0 0.0
    %611 = vmatmul.mubr.f32.gmra.mrb[0].mxu0 %v110
    %v612 = vpop.f32.mrb[0].mxu0
    %v613 = vadd.f32 0.0, %v612
    %v614 = vpop.f32.mrb[0].mxu0
    %615 = vmatprep.mubr.f32.mxu0 0.0
    %616 = vmatmul.mubr.f32.gmra.mrb[0].mxu0 %v113
    %v617 = vpop.f32.mrb[0].mxu0
    %v618 = vadd.f32 0.0, %v617
    %v619 = vpop.f32.mrb[0].mxu0
    %620 = vmatprep.mubr.f32.mxu0 0.0
    %621 = vmatmul.mubr.f32.gmra.mrb[0].mxu0 %v116
    %v622 = vpop.f32.mrb[0].mxu0
    %v623 = vadd.f32 0.0, %v622
    %v624 = vpop.f32.mrb[0].mxu0
    %625 = vmatprep.mubr.f32.mxu0 0.0
    %626 = vmatmul.mubr.f32.gmra.mrb[0].mxu0 %v119
    %v627 = vpop.f32.mrb[0].mxu0
    %v628 = vadd.f32 0.0, %v627
    %v629 = vpop.f32.mrb[0].mxu0
    %630 = vdwg.mxu0
    %631 = vmatprep.subr.mxu0 0.0
    %632 = vmatpush1.msra.mxu0 %v68
    %633 = vmatprep.subr.mxu0 0.0
    %634 = vmatpush1.msra.mxu0 %v69
    %635 = vmatprep.subr.mxu0 0.0
    %636 = vmatpush1.msra.mxu0 0.0
    %637 = vmatprep.subr.mxu0 0.0
    %638 = vmatpush1.msra.mxu0 0.0
    %639 = vmatprep.subr.mxu0 0.0
    %640 = vmatpush1.msra.mxu0 0.0
    %641 = vmatprep.subr.mxu0 0.0
    %642 = vmatpush1.msra.mxu0 0.0
    %643 = vmatprep.subr.mxu0 0.0
    %644 = vmatpush1.msra.mxu0 0.0
    %645 = vmatprep.subr.mxu0 0.0
    %646 = vmatpush1.msra.mxu0 0.0
    %647 = vmatprep.subr.mxu0 0.0
    %648 = vmatpush1.msra.mxu0 0.0
    %649 = vmatprep.subr.mxu0 0.0
    %650 = vmatpush1.msra.mxu0 0.0
    %651 = vmatprep.subr.mxu0 0.0
    %652 = vmatpush1.msra.mxu0 0.0
    %653 = vmatprep.subr.mxu0 0.0
    %654 = vmatpush1.msra.mxu0 0.0
    %655 = vmatprep.subr.mxu0 0.0
    %656 = vmatpush1.msra.mxu0 0.0
    %657 = vmatprep.subr.mxu0 0.0
    %658 = vmatpush1.msra.mxu0 0.0
    %659 = vmatprep.subr.mxu0 0.0
    %660 = vmatpush1.msra.mxu0 0.0
    %661 = vmatprep.subr.mxu0 0.0
    %662 = vmatpush1.msra.mxu0 0.0
    %663 = vmatprep.subr.mxu0 0.0
    %664 = vmatpush1.msra.mxu0 0.0
    %665 = vmatprep.subr.mxu0 0.0
    %666 = vmatpush1.msra.mxu0 0.0
    %667 = vmatprep.subr.mxu0 0.0
    %668 = vmatpush1.msra.mxu0 0.0
    %669 = vmatprep.subr.mxu0 0.0
    %670 = vmatpush1.msra.mxu0 0.0
    %671 = vmatprep.subr.mxu0 0.0
    %672 = vmatpush1.msra.mxu0 0.0
    %673 = vmatprep.subr.mxu0 0.0
    %674 = vmatpush1.msra.mxu0 0.0
    %675 = vmatprep.subr.mxu0 0.0
    %676 = vmatpush1.msra.mxu0 0.0
    %677 = vmatprep.subr.mxu0 0.0
    %678 = vmatpush1.msra.mxu0 0.0
    %679 = vmatprep.subr.mxu0 0.0
    %680 = vmatpush1.msra.mxu0 0.0
    %681 = vmatprep.subr.mxu0 0.0
    %682 = vmatpush1.msra.mxu0 0.0
    %683 = vmatprep.subr.mxu0 0.0
    %684 = vmatpush1.msra.mxu0 0.0
    %685 = vmatprep.subr.mxu0 0.0
    %686 = vmatpush1.msra.mxu0 0.0
    %687 = vmatprep.subr.mxu0 0.0
    %688 = vmatpush1.msra.mxu0 0.0
    %689 = vmatprep.subr.mxu0 0.0
    %690 = vmatpush1.msra.mxu0 0.0
    %691 = vmatprep.subr.mxu0 0.0
    %692 = vmatpush1.msra.mxu0 0.0
    %693 = vmatprep.subr.mxu0 0.0
    %694 = vmatpush1.msra.mxu0 0.0
    %695 = vmatprep.mubr.f32.mxu0 0.0
    %696 = vmatmul.mubr.f32.gmra.mrb[0].mxu0 %v110
    %v697 = vpop.f32.mrb[0].mxu0
    %v698 = vadd.f32 0.0, %v697
    %v699 = vpop.f32.mrb[0].mxu0
    %700 = vmatprep.mubr.f32.mxu0 0.0
    %701 = vmatmul.mubr.f32.gmra.mrb[0].mxu0 %v113
    %v702 = vpop.f32.mrb[0].mxu0
    %v703 = vadd.f32 0.0, %v702
    %v704 = vpop.f32.mrb[0].mxu0
    %705 = vmatprep.mubr.f32.mxu0 0.0
    %706 = vmatmul.mubr.f32.gmra.mrb[0].mxu0 %v116
    %v707 = vpop.f32.mrb[0].mxu0
    %v708 = vadd.f32 0.0, %v707
    %v709 = vpop.f32.mrb[0].mxu0
    %710 = vmatprep.mubr.f32.mxu0 0.0
    %711 = vmatmul.mubr.f32.gmra.mrb[0].mxu0 %v119
    %v712 = vpop.f32.mrb[0].mxu0
    %v713 = vadd.f32 0.0, %v712
    %v714 = vpop.f32.mrb[0].mxu0
    %715 = vdwg.mxu0
    %716 = vmatprep.subr.mxu0 0.0
    %717 = vmatpush1.msra.mxu0 %v70
    %718 = vmatprep.subr.mxu0 0.0
    %719 = vmatpush1.msra.mxu0 %v71
    %720 = vmatprep.subr.mxu0 0.0
    %721 = vmatpush1.msra.mxu0 0.0
    %722 = vmatprep.subr.mxu0 0.0
    %723 = vmatpush1.msra.mxu0 0.0
    %724 = vmatprep.subr.mxu0 0.0
    %725 = vmatpush1.msra.mxu0 0.0
    %726 = vmatprep.subr.mxu0 0.0
    %727 = vmatpush1.msra.mxu0 0.0
    %728 = vmatprep.subr.mxu0 0.0
    %729 = vmatpush1.msra.mxu0 0.0
    %730 = vmatprep.subr.mxu0 0.0
    %731 = vmatpush1.msra.mxu0 0.0
    %732 = vmatprep.subr.mxu0 0.0
    %733 = vmatpush1.msra.mxu0 0.0
    %734 = vmatprep.subr.mxu0 0.0
    %735 = vmatpush1.msra.mxu0 0.0
    %736 = vmatprep.subr.mxu0 0.0
    %737 = vmatpush1.msra.mxu0 0.0
    %738 = vmatprep.subr.mxu0 0.0
    %739 = vmatpush1.msra.mxu0 0.0
    %740 = vmatprep.subr.mxu0 0.0
    %741 = vmatpush1.msra.mxu0 0.0
    %742 = vmatprep.subr.mxu0 0.0
    %743 = vmatpush1.msra.mxu0 0.0
    %744 = vmatprep.subr.mxu0 0.0
    %745 = vmatpush1.msra.mxu0 0.0
    %746 = vmatprep.subr.mxu0 0.0
    %747 = vmatpush1.msra.mxu0 0.0
    %748 = vmatprep.subr.mxu0 0.0
    %749 = vmatpush1.msra.mxu0 0.0
    %750 = vmatprep.subr.mxu0 0.0
    %751 = vmatpush1.msra.mxu0 0.0
    %752 = vmatprep.subr.mxu0 0.0
    %753 = vmatpush1.msra.mxu0 0.0
    %754 = vmatprep.subr.mxu0 0.0
    %755 = vmatpush1.msra.mxu0 0.0
    %756 = vmatprep.subr.mxu0 0.0
    %757 = vmatpush1.msra.mxu0 0.0
    %758 = vmatprep.subr.mxu0 0.0
    %759 = vmatpush1.msra.mxu0 0.0
    %760 = vmatprep.subr.mxu0 0.0
    %761 = vmatpush1.msra.mxu0 0.0
    %762 = vmatprep.subr.mxu0 0.0
    %763 = vmatpush1.msra.mxu0 0.0
    %764 = vmatprep.subr.mxu0 0.0
    %765 = vmatpush1.msra.mxu0 0.0
    %766 = vmatprep.subr.mxu0 0.0
    %767 = vmatpush1.msra.mxu0 0.0
    %768 = vmatprep.subr.mxu0 0.0
    %769 = vmatpush1.msra.mxu0 0.0
    %770 = vmatprep.subr.mxu0 0.0
    %771 = vmatpush1.msra.mxu0 0.0
    %772 = vmatprep.subr.mxu0 0.0
    %773 = vmatpush1.msra.mxu0 0.0
    %774 = vmatprep.subr.mxu0 0.0
    %775 = vmatpush1.msra.mxu0 0.0
    %776 = vmatprep.subr.mxu0 0.0
    %777 = vmatpush1.msra.mxu0 0.0
    %778 = vmatprep.subr.mxu0 0.0
    %779 = vmatpush1.msra.mxu0 0.0
    %780 = vmatprep.mubr.f32.mxu0 0.0
    %781 = vmatmul.mubr.f32.gmra.mrb[0].mxu0 %v110
    %v782 = vpop.f32.mrb[0].mxu0
    %v783 = vadd.f32 0.0, %v782
    %v784 = vpop.f32.mrb[0].mxu0
    %785 = vmatprep.mubr.f32.mxu0 0.0
    %786 = vmatmul.mubr.f32.gmra.mrb[0].mxu0 %v113
    %v787 = vpop.f32.mrb[0].mxu0
    %v788 = vadd.f32 0.0, %v787
    %v789 = vpop.f32.mrb[0].mxu0
    %790 = vmatprep.mubr.f32.mxu0 0.0
    %791 = vmatmul.mubr.f32.gmra.mrb[0].mxu0 %v116
    %v792 = vpop.f32.mrb[0].mxu0
    %v793 = vadd.f32 0.0, %v792
    %v794 = vpop.f32.mrb[0].mxu0
    %795 = vmatprep.mubr.f32.mxu0 0.0
    %796 = vmatmul.mubr.f32.gmra.mrb[0].mxu0 %v119
    %v797 = vpop.f32.mrb[0].mxu0
    %v798 = vadd.f32 0.0, %v797
    %v799 = vpop.f32.mrb[0].mxu0
    %800 = vdwg.mxu0
    %v802 = vsel %vm108, %v188, 0
    %v805 = vsel %vm108, %v193, 0
    %v808 = vsel %vm108, %v198, 0
    %v811 = vsel %vm108, %v203, 0
    %v814 = vsel %vm108, %v273, 0
    %v817 = vsel %vm108, %v278, 0
    %v820 = vsel %vm108, %v283, 0
    %v823 = vsel %vm108, %v288, 0
    %v826 = vsel %vm108, %v358, 0
    %v829 = vsel %vm108, %v363, 0
    %v832 = vsel %vm108, %v368, 0
    %v835 = vsel %vm108, %v373, 0
    %v838 = vsel %vm108, %v443, 0
    %v841 = vsel %vm108, %v448, 0
    %v844 = vsel %vm108, %v453, 0
    %v847 = vsel %vm108, %v458, 0
    %v850 = vsel %vm108, %v528, 0
    %v853 = vsel %vm108, %v533, 0
    %v856 = vsel %vm108, %v538, 0
    %v859 = vsel %vm108, %v543, 0
    %v862 = vsel %vm108, %v613, 0
    %v865 = vsel %vm108, %v618, 0
    %v868 = vsel %vm108, %v623, 0
    %v871 = vsel %vm108, %v628, 0
    %v874 = vsel %vm108, %v698, 0
    %v877 = vsel %vm108, %v703, 0
    %v880 = vsel %vm108, %v708, 0
    %v883 = vsel %vm108, %v713, 0
    %v886 = vsel %vm108, %v783, 0
    %v889 = vsel %vm108, %v788, 0
    %v892 = vsel %vm108, %v793, 0
    %v895 = vsel %vm108, %v798, 0
    %897 = vmatprep.subr.mxu0 0.0
    %898 = vmatpush1.msra.mxu0 %v74
    %899 = vmatprep.subr.mxu0 0.0
    %900 = vmatpush1.msra.mxu0 %v75
    %901 = vmatprep.subr.mxu0 0.0
    %902 = vmatpush1.msra.mxu0 0.0
    %903 = vmatprep.subr.mxu0 0.0
    %904 = vmatpush1.msra.mxu0 0.0
    %905 = vmatprep.subr.mxu0 0.0
    %906 = vmatpush1.msra.mxu0 0.0
    %907 = vmatprep.subr.mxu0 0.0
    %908 = vmatpush1.msra.mxu0 0.0
    %909 = vmatprep.subr.mxu0 0.0
    %910 = vmatpush1.msra.mxu0 0.0
    %911 = vmatprep.subr.mxu0 0.0
    %912 = vmatpush1.msra.mxu0 0.0
    %913 = vmatprep.subr.mxu0 0.0
    %914 = vmatpush1.msra.mxu0 0.0
    %915 = vmatprep.subr.mxu0 0.0
    %916 = vmatpush1.msra.mxu0 0.0
    %917 = vmatprep.subr.mxu0 0.0
    %918 = vmatpush1.msra.mxu0 0.0
    %919 = vmatprep.subr.mxu0 0.0
    %920 = vmatpush1.msra.mxu0 0.0
    %921 = vmatprep.subr.mxu0 0.0
    %922 = vmatpush1.msra.mxu0 0.0
    %923 = vmatprep.subr.mxu0 0.0
    %924 = vmatpush1.msra.mxu0 0.0
    %925 = vmatprep.subr.mxu0 0.0
    %926 = vmatpush1.msra.mxu0 0.0
    %927 = vmatprep.subr.mxu0 0.0
    %928 = vmatpush1.msra.mxu0 0.0
    %929 = vmatprep.subr.mxu0 0.0
    %930 = vmatpush1.msra.mxu0 0.0
    %931 = vmatprep.subr.mxu0 0.0
    %932 = vmatpush1.msra.mxu0 0.0
    %933 = vmatprep.subr.mxu0 0.0
    %934 = vmatpush1.msra.mxu0 0.0
    %935 = vmatprep.subr.mxu0 0.0
    %936 = vmatpush1.msra.mxu0 0.0
    %937 = vmatprep.subr.mxu0 0.0
    %938 = vmatpush1.msra.mxu0 0.0
    %939 = vmatprep.subr.mxu0 0.0
    %940 = vmatpush1.msra.mxu0 0.0
    %941 = vmatprep.subr.mxu0 0.0
    %942 = vmatpush1.msra.mxu0 0.0
    %943 = vmatprep.subr.mxu0 0.0
    %944 = vmatpush1.msra.mxu0 0.0
    %945 = vmatprep.subr.mxu0 0.0
    %946 = vmatpush1.msra.mxu0 0.0
    %947 = vmatprep.subr.mxu0 0.0
    %948 = vmatpush1.msra.mxu0 0.0
    %949 = vmatprep.subr.mxu0 0.0
    %950 = vmatpush1.msra.mxu0 0.0
    %951 = vmatprep.subr.mxu0 0.0
    %952 = vmatpush1.msra.mxu0 0.0
    %953 = vmatprep.subr.mxu0 0.0
    %954 = vmatpush1.msra.mxu0 0.0
    %955 = vmatprep.subr.mxu0 0.0
    %956 = vmatpush1.msra.mxu0 0.0
    %957 = vmatprep.subr.mxu0 0.0
    %958 = vmatpush1.msra.mxu0 0.0
    %959 = vmatprep.subr.mxu0 0.0
    %960 = vmatpush1.msra.mxu0 0.0
    %961 = vmatprep.mubr.f32.mxu0 0.0
    %962 = vmatmul.mubr.f32.gmra.mrb[0].mxu0 %v802
    %v963 = vpop.f32.mrb[0].mxu0
    %v964 = vadd.f32 0.0, %v963
    %v965 = vpop.f32.mrb[0].mxu0
    %966 = vmatprep.mubr.f32.mxu0 0.0
    %967 = vmatmul.mubr.f32.gmra.mrb[0].mxu0 %v805
    %v968 = vpop.f32.mrb[0].mxu0
    %v969 = vadd.f32 0.0, %v968
    %v970 = vpop.f32.mrb[0].mxu0
    %971 = vmatprep.mubr.f32.mxu0 0.0
    %972 = vmatmul.mubr.f32.gmra.mrb[0].mxu0 %v808
    %v973 = vpop.f32.mrb[0].mxu0
    %v974 = vadd.f32 0.0, %v973
    %v975 = vpop.f32.mrb[0].mxu0
    %976 = vmatprep.mubr.f32.mxu0 0.0
    %977 = vmatmul.mubr.f32.gmra.mrb[0].mxu0 %v811
    %v978 = vpop.f32.mrb[0].mxu0
    %v979 = vadd.f32 0.0, %v978
    %v980 = vpop.f32.mrb[0].mxu0
    %981 = vmatprep.mubr.f32.mxu0 0.0
    %982 = vmatmul.mubr.f32.gmra.mrb[0].mxu0 %v814
    %v983 = vpop.f32.mrb[0].mxu0
    %v984 = vadd.f32 0.0, %v983
    %v985 = vpop.f32.mrb[0].mxu0
    %986 = vmatprep.mubr.f32.mxu0 0.0
    %987 = vmatmul.mubr.f32.gmra.mrb[0].mxu0 %v817
    %v988 = vpop.f32.mrb[0].mxu0
    %v989 = vadd.f32 0.0, %v988
    %v990 = vpop.f32.mrb[0].mxu0
    %991 = vmatprep.mubr.f32.mxu0 0.0
    %992 = vmatmul.mubr.f32.gmra.mrb[0].mxu0 %v820
    %v993 = vpop.f32.mrb[0].mxu0
    %v994 = vadd.f32 0.0, %v993
    %v995 = vpop.f32.mrb[0].mxu0
    %996 = vmatprep.mubr.f32.mxu0 0.0
    %997 = vmatmul.mubr.f32.gmra.mrb[0].mxu0 %v823
    %v998 = vpop.f32.mrb[0].mxu0
    %v999 = vadd.f32 0.0, %v998
    %v1000 = vpop.f32.mrb[0].mxu0
    %1001 = vmatprep.mubr.f32.mxu0 0.0
    %1002 = vmatmul.mubr.f32.gmra.mrb[0].mxu0 %v826
    %v1003 = vpop.f32.mrb[0].mxu0
    %v1004 = vadd.f32 0.0, %v1003
    %v1005 = vpop.f32.mrb[0].mxu0
    %1006 = vmatprep.mubr.f32.mxu0 0.0
    %1007 = vmatmul.mubr.f32.gmra.mrb[0].mxu0 %v829
    %v1008 = vpop.f32.mrb[0].mxu0
    %v1009 = vadd.f32 0.0, %v1008
    %v1010 = vpop.f32.mrb[0].mxu0
    %1011 = vmatprep.mubr.f32.mxu0 0.0
    %1012 = vmatmul.mubr.f32.gmra.mrb[0].mxu0 %v832
    %v1013 = vpop.f32.mrb[0].mxu0
    %v1014 = vadd.f32 0.0, %v1013
    %v1015 = vpop.f32.mrb[0].mxu0
    %1016 = vmatprep.mubr.f32.mxu0 0.0
    %1017 = vmatmul.mubr.f32.gmra.mrb[0].mxu0 %v835
    %v1018 = vpop.f32.mrb[0].mxu0
    %v1019 = vadd.f32 0.0, %v1018
    %v1020 = vpop.f32.mrb[0].mxu0
    %1021 = vmatprep.mubr.f32.mxu0 0.0
    %1022 = vmatmul.mubr.f32.gmra.mrb[0].mxu0 %v838
    %v1023 = vpop.f32.mrb[0].mxu0
    %v1024 = vadd.f32 0.0, %v1023
    %v1025 = vpop.f32.mrb[0].mxu0
    %1026 = vmatprep.mubr.f32.mxu0 0.0
    %1027 = vmatmul.mubr.f32.gmra.mrb[0].mxu0 %v841
    %v1028 = vpop.f32.mrb[0].mxu0
    %v1029 = vadd.f32 0.0, %v1028
    %v1030 = vpop.f32.mrb[0].mxu0
    %1031 = vmatprep.mubr.f32.mxu0 0.0
    %1032 = vmatmul.mubr.f32.gmra.mrb[0].mxu0 %v844
    %v1033 = vpop.f32.mrb[0].mxu0
    %v1034 = vadd.f32 0.0, %v1033
    %v1035 = vpop.f32.mrb[0].mxu0
    %1036 = vmatprep.mubr.f32.mxu0 0.0
    %1037 = vmatmul.mubr.f32.gmra.mrb[0].mxu0 %v847
    %v1038 = vpop.f32.mrb[0].mxu0
    %v1039 = vadd.f32 0.0, %v1038
    %v1040 = vpop.f32.mrb[0].mxu0
    %1041 = vmatprep.mubr.f32.mxu0 0.0
    %1042 = vmatmul.mubr.f32.gmra.mrb[0].mxu0 %v850
    %v1043 = vpop.f32.mrb[0].mxu0
    %v1044 = vadd.f32 0.0, %v1043
    %v1045 = vpop.f32.mrb[0].mxu0
    %1046 = vmatprep.mubr.f32.mxu0 0.0
    %1047 = vmatmul.mubr.f32.gmra.mrb[0].mxu0 %v853
    %v1048 = vpop.f32.mrb[0].mxu0
    %v1049 = vadd.f32 0.0, %v1048
    %v1050 = vpop.f32.mrb[0].mxu0
    %1051 = vmatprep.mubr.f32.mxu0 0.0
    %1052 = vmatmul.mubr.f32.gmra.mrb[0].mxu0 %v856
    %v1053 = vpop.f32.mrb[0].mxu0
    %v1054 = vadd.f32 0.0, %v1053
    %v1055 = vpop.f32.mrb[0].mxu0
    %1056 = vmatprep.mubr.f32.mxu0 0.0
    %1057 = vmatmul.mubr.f32.gmra.mrb[0].mxu0 %v859
    %v1058 = vpop.f32.mrb[0].mxu0
    %v1059 = vadd.f32 0.0, %v1058
    %v1060 = vpop.f32.mrb[0].mxu0
    %1061 = vmatprep.mubr.f32.mxu0 0.0
    %1062 = vmatmul.mubr.f32.gmra.mrb[0].mxu0 %v862
    %v1063 = vpop.f32.mrb[0].mxu0
    %v1064 = vadd.f32 0.0, %v1063
    %v1065 = vpop.f32.mrb[0].mxu0
    %1066 = vmatprep.mubr.f32.mxu0 0.0
    %1067 = vmatmul.mubr.f32.gmra.mrb[0].mxu0 %v865
    %v1068 = vpop.f32.mrb[0].mxu0
    %v1069 = vadd.f32 0.0, %v1068
    %v1070 = vpop.f32.mrb[0].mxu0
    %1071 = vmatprep.mubr.f32.mxu0 0.0
    %1072 = vmatmul.mubr.f32.gmra.mrb[0].mxu0 %v868
    %v1073 = vpop.f32.mrb[0].mxu0
    %v1074 = vadd.f32 0.0, %v1073
    %v1075 = vpop.f32.mrb[0].mxu0
    %1076 = vmatprep.mubr.f32.mxu0 0.0
    %1077 = vmatmul.mubr.f32.gmra.mrb[0].mxu0 %v871
    %v1078 = vpop.f32.mrb[0].mxu0
    %v1079 = vadd.f32 0.0, %v1078
    %v1080 = vpop.f32.mrb[0].mxu0
    %1081 = vmatprep.mubr.f32.mxu0 0.0
    %1082 = vmatmul.mubr.f32.gmra.mrb[0].mxu0 %v874
    %v1083 = vpop.f32.mrb[0].mxu0
    %v1084 = vadd.f32 0.0, %v1083
    %v1085 = vpop.f32.mrb[0].mxu0
    %1086 = vmatprep.mubr.f32.mxu0 0.0
    %1087 = vmatmul.mubr.f32.gmra.mrb[0].mxu0 %v877
    %v1088 = vpop.f32.mrb[0].mxu0
    %v1089 = vadd.f32 0.0, %v1088
    %v1090 = vpop.f32.mrb[0].mxu0
    %1091 = vmatprep.mubr.f32.mxu0 0.0
    %1092 = vmatmul.mubr.f32.gmra.mrb[0].mxu0 %v880
    %v1093 = vpop.f32.mrb[0].mxu0
    %v1094 = vadd.f32 0.0, %v1093
    %v1095 = vpop.f32.mrb[0].mxu0
    %1096 = vmatprep.mubr.f32.mxu0 0.0
    %1097 = vmatmul.mubr.f32.gmra.mrb[0].mxu0 %v883
    %v1098 = vpop.f32.mrb[0].mxu0
    %v1099 = vadd.f32 0.0, %v1098
    %v1100 = vpop.f32.mrb[0].mxu0
    %1101 = vmatprep.mubr.f32.mxu0 0.0
    %1102 = vmatmul.mubr.f32.gmra.mrb[0].mxu0 %v886
    %v1103 = vpop.f32.mrb[0].mxu0
    %v1104 = vadd.f32 0.0, %v1103
    %v1105 = vpop.f32.mrb[0].mxu0
    %1106 = vmatprep.mubr.f32.mxu0 0.0
    %1107 = vmatmul.mubr.f32.gmra.mrb[0].mxu0 %v889
    %v1108 = vpop.f32.mrb[0].mxu0
    %v1109 = vadd.f32 0.0, %v1108
    %v1110 = vpop.f32.mrb[0].mxu0
    %1111 = vmatprep.mubr.f32.mxu0 0.0
    %1112 = vmatmul.mubr.f32.gmra.mrb[0].mxu0 %v892
    %v1113 = vpop.f32.mrb[0].mxu0
    %v1114 = vadd.f32 0.0, %v1113
    %v1115 = vpop.f32.mrb[0].mxu0
    %1116 = vmatprep.mubr.f32.mxu0 0.0
    %1117 = vmatmul.mubr.f32.gmra.mrb[0].mxu0 %v895
    %v1118 = vpop.f32.mrb[0].mxu0
    %v1119 = vadd.f32 0.0, %v1118
    %v1120 = vpop.f32.mrb[0].mxu0
    %1121 = vdwg.mxu0
    %vm1122 = vcmask 261120
    %1123 = vst.msk [vmem:[#allocation8] sm:$0xff] %vm1122, %v964
    %1124 = vst.msk [vmem:[#allocation8 + $0x8] sm:$0xff] %vm1122, %v969
    %1125 = vst.msk [vmem:[#allocation8 + $0x10] sm:$0xff] %vm1122, %v974
    %1126 = vst.msk [vmem:[#allocation8 + $0x18] sm:$0xff] %vm1122, %v979
    %1127 = vst.msk [vmem:[#allocation8 + $0x20] sm:$0xff] %vm1122, %v984
    %1128 = vst.msk [vmem:[#allocation8 + $0x28] sm:$0xff] %vm1122, %v989
    %1129 = vst.msk [vmem:[#allocation8 + $0x30] sm:$0xff] %vm1122, %v994
    %1130 = vst.msk [vmem:[#allocation8 + $0x38] sm:$0xff] %vm1122, %v999
    %1131 = vst.msk [vmem:[#allocation8 + $0x40] sm:$0xff] %vm1122, %v1004
    %1132 = vst.msk [vmem:[#allocation8 + $0x48] sm:$0xff] %vm1122, %v1009
    %1133 = vst.msk [vmem:[#allocation8 + $0x50] sm:$0xff] %vm1122, %v1014
    %1134 = vst.msk [vmem:[#allocation8 + $0x58] sm:$0xff] %vm1122, %v1019
    %1135 = vst.msk [vmem:[#allocation8 + $0x60] sm:$0xff] %vm1122, %v1024
    %1136 = vst.msk [vmem:[#allocation8 + $0x68] sm:$0xff] %vm1122, %v1029
    %1137 = vst.msk [vmem:[#allocation8 + $0x70] sm:$0xff] %vm1122, %v1034
    %1138 = vst.msk [vmem:[#allocation8 + $0x78] sm:$0xff] %vm1122, %v1039
    %1139 = vst.msk [vmem:[#allocation8 + $0x80] sm:$0xff] %vm1122, %v1044
    %1140 = vst.msk [vmem:[#allocation8 + $0x88] sm:$0xff] %vm1122, %v1049
    %1141 = vst.msk [vmem:[#allocation8 + $0x90] sm:$0xff] %vm1122, %v1054
    %1142 = vst.msk [vmem:[#allocation8 + $0x98] sm:$0xff] %vm1122, %v1059
    %1143 = vst.msk [vmem:[#allocation8 + $0xa0] sm:$0xff] %vm1122, %v1064
    %1144 = vst.msk [vmem:[#allocation8 + $0xa8] sm:$0xff] %vm1122, %v1069
    %1145 = vst.msk [vmem:[#allocation8 + $0xb0] sm:$0xff] %vm1122, %v1074
    %1146 = vst.msk [vmem:[#allocation8 + $0xb8] sm:$0xff] %vm1122, %v1079
    %1147 = vst.msk [vmem:[#allocation8 + $0xc0] sm:$0xff] %vm1122, %v1084
    %1148 = vst.msk [vmem:[#allocation8 + $0xc8] sm:$0xff] %vm1122, %v1089
    %1149 = vst.msk [vmem:[#allocation8 + $0xd0] sm:$0xff] %vm1122, %v1094
    %1150 = vst.msk [vmem:[#allocation8 + $0xd8] sm:$0xff] %vm1122, %v1099
    %1151 = vst.msk [vmem:[#allocation8 + $0xe0] sm:$0xff] %vm1122, %v1104
    %1152 = vst.msk [vmem:[#allocation8 + $0xe8] sm:$0xff] %vm1122, %v1109
    %1153 = vst.msk [vmem:[#allocation8 + $0xf0] sm:$0xff] %vm1122, %v1114
    %1154 = vst.msk [vmem:[#allocation8 + $0xf8] sm:$0xff] %vm1122, %v1119
    // Predicated region
    $region26: #{tpu_custom_call.1} parent=1 // pred_check
      _
    $region27: #{tpu_custom_call.1} parent=1 // pred_check_branch
      %1156 = sbr.rel (0) target = $region29
    $region28: #{tpu_custom_call.1} parent=1 // pred_region
      %s1158 = ssub.s32 4096, 4096
      %1159 = vsyncadd [#allocation4], %s1158
      %s1160 = sshll.u32 [#allocation8], 4
      %s1161 = int_to_ptr.vmem [resolvable:$true] %s1160
      %1166 = dma.vmem_to_hbm [thread:$0]  %s1161, 4096, %s3, [#allocation4], 128, 128, 8
    $region29: #{tpu_custom_call.1} parent=1 // pred_fallthru
      _
    // Predicated region
    $region30: #{tpu_custom_call.1} parent=1 // pred_check
      _
    $region31: #{tpu_custom_call.1} parent=1 // pred_check_branch
      %1168 = sbr.rel (0) target = $region33
    $region32: #{tpu_custom_call.1} parent=1 // pred_region
      %1169 = dma.done [#allocation4], 4096
    $region33: #{tpu_custom_call.1} parent=1 // pred_fallthru
      _
    %1170 = vsyncpa [#allocation3], 1
    %1171 = vsyncpa [#allocation6], 1
    %1172 = vsyncpa [#allocation4], 1

</llo_original>
